<compile_context>
chip_gen: v5e
topology: v5e:2x2
jax: 0.10.0
libtpu: 0.0.40
codegen_flags: <defaults>
</compile_context>

<pallas_src>
import jax
import jax.numpy as jnp
from jax.experimental import pallas as pl
from jax.experimental.pallas import tpu as pltpu  # noqa: F401  (TPU backend registration)

POOL = 6          # MaxPool1d(6)
LANE_PAD = 64     # per-batch pooled-length padding (50 -> 64) => 128-lane pooling slabs


def _round_up(x, m):
    return (x + m - 1) // m * m


def _same_pad(k):
    total = k - 1
    left = total // 2
    return left, total - left


# ----------------------------------------------------------------------------
# Fused kernel: conv stack -> biLSTM -> folded head -> fc2 -> softmax
# ----------------------------------------------------------------------------
def _fused_kernel(xcol_ref, cw_ref, cbias_ref,
                  winp_ref, bg_ref, whh_ref,
                  fwh_ref, fb1_ref, fw2_ref, fb2_ref,
                  o_ref):
    f32, bf16 = jnp.float32, jnp.bfloat16
    N = o_ref.shape[0]
    T2 = cw_ref.shape[0]           # 2 * (3*vocab): normal + time-reversed channel copies
    T = T2 // 2                    # biLSTM sequence length (= concatenated conv channels)
    H2 = whh_ref.shape[0]          # 2 * hidden  ([fwd | rev] state lanes)
    Dp = winp_ref.shape[0] // 2    # padded pooled length per batch row
    slab = N * Dp                  # lane width of one pooling phase (128-lane aligned)

    # ---- conv: all 3 'same' Conv1d branches x both batch rows as ONE bf16 MXU matmul.
    #      Rows 0:T are channels in order; rows T:2T are a time-reversed copy that feeds
    #      the reverse LSTM direction (no in-kernel row flip needed anywhere).
    y = jnp.dot(cw_ref[...], xcol_ref[...], preferred_element_type=f32)   # (2T, 6*slab)
    m = y[:, 0:slab]
    for j in range(1, POOL):                       # MaxPool1d(6): max over 6 aligned slabs
        m = jnp.maximum(m, y[:, j * slab:(j + 1) * slab])
    act = jnp.maximum(m + cbias_ref[...], 0.0)     # bias+ReLU commute with max   (2T, slab)

    # ---- hoisted biLSTM input projection: one (T, 2Dp)@(2Dp, 8H) bf16 matmul per batch
    #      row; per-step (N, 8H) slabs are assembled BEFORE the recurrence so nothing but
    #      the h@Whh matmul + gate math sits on the serial dependence chain.
    winp = winp_ref[...]
    bg = bg_ref[...]
    gx = []
    for n in range(N):
        xcat = jnp.concatenate([act[0:T, n * Dp:(n + 1) * Dp],
                                act[T:T2, n * Dp:(n + 1) * Dp]], axis=1)   # (T, 2*Dp)
        gx.append(jnp.dot(xcat.astype(bf16), winp, preferred_element_type=f32) + bg)
    gx_steps = [jnp.concatenate([gx[n][s:s + 1, :] for n in range(N)], axis=0)
                for s in range(T)]                                         # T x (N, 8H)

    # ---- bidirectional recurrence, fully unrolled: ONE block-diagonal matmul and
    #      3 wide EUP pushes per step; state/gate math in f32.
    whh = whh_ref[...]
    h_cat = jnp.zeros((N, H2), f32)        # [h_fwd | h_rev]
    c_cat = jnp.zeros((N, H2), f32)
    hs = []
    for s in range(T):
        g = gx_steps[s] + jnp.dot(h_cat.astype(bf16), whh, preferred_element_type=f32)
        sg = jax.nn.sigmoid(g[:, 0:3 * H2])          # I, F, O gate groups in one push
        gt = jnp.tanh(g[:, 3 * H2:4 * H2])           # G group
        i_g, f_g, o_g = sg[:, 0:H2], sg[:, H2:2 * H2], sg[:, 2 * H2:3 * H2]
        c_cat = f_g * c_cat + i_g * gt
        h_cat = o_g * jnp.tanh(c_cat)
        hs.append(h_cat)        # step s -> [h_fwd(time s) | h_rev(time T-1-s)]

    # ---- head: Linear(2H,H) + Flatten + Linear(T*H,128) folded (exactly) into ONE matmul
    #      on the register-resident hidden states (no scratch stores / reloads).
    h_all = jnp.concatenate(hs, axis=1).astype(bf16)                       # (N, 2*T*H)
    z1 = jnp.dot(h_all, fwh_ref[...], preferred_element_type=f32) + fb1_ref[...]
    z1 = jnp.maximum(z1, 0.0)
    # TODO(synk): nn.Dropout(0.1) layers are stochastic in train mode; identity (eval) here.
    z2 = jnp.dot(z1.astype(bf16), fw2_ref[...], preferred_element_type=f32) + fb2_ref[...]
    mx = jnp.max(z2, axis=1, keepdims=True)
    e = jnp.exp(z2 - mx)
    o_ref[...] = e / jnp.sum(e, axis=1, keepdims=True)


# ----------------------------------------------------------------------------
# One-time weight folding (hoisted off the per-call path)
# ----------------------------------------------------------------------------
def prepare_params(p):
    f32, bf16 = jnp.float32, jnp.bfloat16
    V = p["w_c1"].shape[0]
    H = p["w_hh_f"].shape[1]
    T = 3 * V
    D = p["w_ih_f"].shape[1]
    Dp = _round_up(D, LANE_PAD)
    nf = p["w_fc1"].shape[0]

    # Block-diagonal conv weight over the 3 branches + time-reversed copy of the channels.
    conv_ws = [p["w_c1"], p["w_c2"], p["w_c3"]]
    conv_bs = [p["b_c1"], p["b_c2"], p["b_c3"]]
    K = sum(int(w.shape[-1]) * V for w in conv_ws)
    cw = jnp.zeros((T, K), f32)
    off = 0
    for b, w in enumerate(conv_ws):
        k = int(w.shape[-1])
        blk = jnp.transpose(w, (0, 2, 1)).reshape(V, k * V)     # [co, dk*V + ci]
        cw = cw.at[b * V:(b + 1) * V, off:off + k * V].set(blk)
        off += k * V
    cbias = jnp.concatenate(conv_bs).reshape(T, 1).astype(f32)
    cw_ext = jnp.concatenate([cw, cw[::-1]], axis=0).astype(bf16)          # (2T, K)
    cbias_ext = jnp.concatenate([cbias, cbias[::-1]], axis=0)              # (2T, 1)

    # biLSTM weights in merged gate layout [I|F|O|G], each group = [fwd H | rev H],
    # matching the state layout [h_fwd | h_rev].  (torch gate row order is i,f,g,o.)
    def split_ifog(w_t):
        return (w_t[:, 0:H], w_t[:, H:2 * H], w_t[:, 3 * H:4 * H], w_t[:, 2 * H:3 * H])

    wfT, wrT = p["w_ih_f"].T, p["w_ih_r"].T                   # (D, 4H)
    zD = jnp.zeros((D, H), f32)
    fi, ff, fo, fg = split_ifog(wfT)
    ri, rf, ro, rg = split_ifog(wrT)
    wf_proj = jnp.concatenate([fi, zD, ff, zD, fo, zD, fg, zD], axis=1)    # fwd gate cols
    wr_proj = jnp.concatenate([zD, ri, zD, rf, zD, ro, zD, rg], axis=1)    # rev gate cols
    wf_proj = jnp.pad(wf_proj, ((0, Dp - D), (0, 0)))
    wr_proj = jnp.pad(wr_proj, ((0, Dp - D), (0, 0)))
    w_inp = jnp.concatenate([wf_proj, wr_proj], axis=0).astype(bf16)       # (2*Dp, 8H)

    hfT, hrT = p["w_hh_f"].T, p["w_hh_r"].T                   # (H, 4H)
    zH = jnp.zeros((H, H), f32)
    hfi, hff, hfo, hfg = split_ifog(hfT)
    hri, hrf, hro, hrg = split_ifog(hrT)
    whh_top = jnp.concatenate([hfi, zH, hff, zH, hfo, zH, hfg, zH], axis=1)
    whh_bot = jnp.concatenate([zH, hri, zH, hrf, zH, hro, zH, hrg], axis=1)
    whh_blk = jnp.concatenate([whh_top, whh_bot], axis=0).astype(bf16)     # (2H, 8H)

    bfv = p["b_ih_f"] + p["b_hh_f"]
    brv = p["b_ih_r"] + p["b_hh_r"]
    bg = jnp.concatenate([bfv[0:H], brv[0:H], bfv[H:2 * H], brv[H:2 * H],
                          bfv[3 * H:4 * H], brv[3 * H:4 * H],
                          bfv[2 * H:3 * H], brv[2 * H:3 * H]]).reshape(1, 8 * H).astype(f32)

    # Fold Linear(2H->H) + Flatten + Linear(T*H->128) into one (2*T*H, 128) matrix whose
    # row blocks follow the per-step hidden layout [h_fwd(s) | h_rev(T-1-s)]  (exact).
    w1r = p["w_fc1"].reshape(nf, T, H)                                     # [k, t, j]
    a_f = jnp.einsum("ji,ktj->tik", p["w_l"][:, :H], w1r)                  # (T, H, nf)
    a_b = jnp.einsum("ji,ktj->tik", p["w_l"][:, H:], w1r)
    fw_head = jnp.concatenate(
        [jnp.concatenate([a_f[s], a_b[T - 1 - s]], axis=0) for s in range(T)],
        axis=0).astype(bf16)                                               # (2*T*H, nf)
    fb1 = (jnp.einsum("j,ktj->k", p["b_l"], w1r) + p["b_fc1"]).reshape(1, nf).astype(f32)
    fw2 = p["w_fc2"].T.astype(bf16)
    fb2 = p["b_fc2"].reshape(1, -1).astype(f32)

    return dict(cw_ext=cw_ext, cbias_ext=cbias_ext, w_inp=w_inp, bg=bg, whh_blk=whh_blk,
                fw_head=fw_head, fb1=fb1, fw2=fw2, fb2=fb2)


# ----------------------------------------------------------------------------
# Per-call wrapper: layout-only im2col (static slices, no gather) + one pallas_call
# ----------------------------------------------------------------------------
def _build_xcol(x, conv_ks, dp):
    """Columns ordered (pool phase j, batch n, pooled position d), d padded to dp so every
    pooling-phase slab is a whole number of 128-lane vregs."""
    N, V, L = x.shape
    D = L // POOL
    Lc = D * POOL
    cols = []
    for k in conv_ks:
        left, right = _same_pad(k)
        xp = jnp.pad(x, ((0, 0), (0, 0), (left, right)))
        win = jnp.stack([xp[:, :, dk:dk + Lc] for dk in range(k)], axis=-1)  # (N,V,Lc,k)
        win = win.reshape(N, V, D, POOL, k)                                   # l = d*POOL + j
        win = jnp.transpose(win, (4, 1, 3, 0, 2))                             # (k,V,j,n,d)
        win = jnp.pad(win, ((0, 0), (0, 0), (0, 0), (0, 0), (0, dp - D)))
        cols.append(win.reshape(k * V, POOL * N * dp))
    return jnp.concatenate(cols, axis=0).astype(jnp.bfloat16)                 # (K, 6*N*dp)


def make_forward(params):
    prep = prepare_params(params)            # weight-only folding: runs ONCE
    d_lstm = int(params["w_ih_f"].shape[1])
    conv_ks = tuple(int(params[k].shape[-1]) for k in ("w_c1", "w_c2", "w_c3"))
    n_cls = int(params["w_fc2"].shape[0])
    dp = _round_up(d_lstm, LANE_PAD)

    def _forward(x, prep):
        N, V, L = x.shape
        assert L % POOL == 0 and L // POOL == d_lstm, (
            f"input length {L} must satisfy L % 6 == 0 and L // 6 == {d_lstm}")
        xcol = _build_xcol(x, conv_ks, dp)
        # Single fused kernel; total working set < 2 MiB so weights, im2col slab and
        # activations all stay VMEM-resident (no grid, no HBM round trips between stages).
        return pl.pallas_call(
            _fused_kernel,
            out_shape=jax.ShapeDtypeStruct((N, n_cls), jnp.float32),
        )(xcol, prep["cw_ext"], prep["cbias_ext"], prep["w_inp"], prep["bg"],
          prep["whh_blk"], prep["fw_head"], prep["fb1"], prep["fw2"], prep["fb2"])

    jitted = jax.jit(_forward)
    return lambda x: jitted(x, prep)


# ----------------------------------------------------------------------------
# Pure-JAX reference (mirrors the PyTorch module op-by-op, exact f32 matmuls)
# ----------------------------------------------------------------------------
def reference_forward(x, p):
    hp = jax.lax.Precision.HIGHEST
    N, V, L = x.shape
    H = p["w_hh_f"].shape[1]

    outs = []
    for w, b in [(p["w_c1"], p["b_c1"]), (p["w_c2"], p["b_c2"]), (p["w_c3"], p["b_c3"])]:
        k = w.shape[-1]
        left, right = _same_pad(k)
        y = jax.lax.conv_general_dilated(
            x, w, window_strides=(1,), padding=[(left, right)],
            dimension_numbers=("NCH", "OIH", "NCH"), precision=hp)
        y = jax.nn.relu(y + b[None, :, None])
        Lp = y.shape[-1] // POOL
        y = jnp.max(y[:, :, :Lp * POOL].reshape(N, V, Lp, POOL), axis=-1)
        outs.append(y)
    seq = jnp.concatenate(outs, axis=1)                       # (N, 3V, L//6)

    def run_lstm(x_tnd, w_ih, w_hh, b_ih, b_hh):
        def step(carry, x_t):
            h, c = carry
            g = (jnp.dot(x_t, w_ih.T, precision=hp)
                 + jnp.dot(h, w_hh.T, precision=hp) + b_ih + b_hh)
            i = jax.nn.sigmoid(g[:, 0:H])
            f = jax.nn.sigmoid(g[:, H:2 * H])
            gg = jnp.tanh(g[:, 2 * H:3 * H])
            o = jax.nn.sigmoid(g[:, 3 * H:4 * H])
            c = f * c + i * gg
            h = o * jnp.tanh(c)
            return (h, c), h
        h0 = jnp.zeros((x_tnd.shape[1], H), jnp.float32)
        _, hs = jax.lax.scan(step, (h0, h0), x_tnd)
        return hs                                             # (T, N, H)

    x_tnd = jnp.transpose(seq, (1, 0, 2))                     # (T, N, D)
    hf = run_lstm(x_tnd, p["w_ih_f"], p["w_hh_f"], p["b_ih_f"], p["b_hh_f"])
    hb = run_lstm(x_tnd[::-1], p["w_ih_r"], p["w_hh_r"], p["b_ih_r"], p["b_hh_r"])[::-1]
    out = jnp.transpose(jnp.concatenate([hf, hb], axis=-1), (1, 0, 2))   # (N, T, 2H)

    lin = jnp.dot(out, p["w_l"].T, precision=hp) + p["b_l"]
    flat = lin.reshape(N, -1)
    z1 = jax.nn.relu(jnp.dot(flat, p["w_fc1"].T, precision=hp) + p["b_fc1"])
    z2 = jnp.dot(z1, p["w_fc2"].T, precision=hp) + p["b_fc2"]
    return jax.nn.softmax(z2, axis=1)


# ----------------------------------------------------------------------------
if __name__ == "__main__":
    N, V, L, H = 2, 4, 300, 32          # L=300 -> pooled length 50 == biLSTM input_size
    T = 3 * V
    D = L // POOL

    ks = jax.random.split(jax.random.PRNGKey(0), 32)

    def nrm(k, shape, scale):
        return scale * jax.random.normal(k, shape, dtype=jnp.float32)

    params = {
        "w_c1": nrm(ks[0], (V, V, 27), (V * 27) ** -0.5),
        "b_c1": nrm(ks[1], (V,), 0.05),
        "w_c2": nrm(ks[2], (V, V, 14), (V * 14) ** -0.5),
        "b_c2": nrm(ks[3], (V,), 0.05),
        "w_c3": nrm(ks[4], (V, V, 7), (V * 7) ** -0.5),
        "b_c3": nrm(ks[5], (V,), 0.05),
        "w_ih_f": nrm(ks[6], (4 * H, D), D ** -0.5),
        "w_hh_f": nrm(ks[7], (4 * H, H), H ** -0.5),
        "b_ih_f": nrm(ks[8], (4 * H,), 0.05),
        "b_hh_f": nrm(ks[9], (4 * H,), 0.05),
        "w_ih_r": nrm(ks[10], (4 * H, D), D ** -0.5),
        "w_hh_r": nrm(ks[11], (4 * H, H), H ** -0.5),
        "b_ih_r": nrm(ks[12], (4 * H,), 0.05),
        "b_hh_r": nrm(ks[13], (4 * H,), 0.05),
        "w_l": nrm(ks[14], (H, 2 * H), (2 * H) ** -0.5),
        "b_l": nrm(ks[15], (H,), 0.05),
        "w_fc1": nrm(ks[16], (128, T * H), (T * H) ** -0.5),
        "b_fc1": nrm(ks[17], (128,), 0.05),
        "w_fc2": nrm(ks[18], (2, 128), 128 ** -0.5),
        "b_fc2": nrm(ks[19], (2,), 0.05),
    }

    x = jax.random.normal(ks[20], (N, V, L), dtype=jnp.float32)

    forward = make_forward(params)                     # folding runs once, outside jit path
    y = jax.block_until_ready(forward(x))
    y_ref = jax.block_until_ready(jax.jit(reference_forward)(x, params))

    max_err = float(jnp.max(jnp.abs(y - y_ref)))
    row_sum_err = float(jnp.max(jnp.abs(jnp.sum(y, axis=1) - 1.0)))
    # Kernel matmuls use the bf16 MXU path (per perf review); reference is exact f32
    # (Precision.HIGHEST), so allow bf16-level tolerance on the 2-class softmax.
    if y.shape == (N, 2) and max_err < 2e-2 and row_sum_err < 1e-4:
        print("KERNEL_OK")
    else:
        print(f"MISMATCH max_err={max_err} row_sum_err={row_sum_err}")
</pallas_src>

<mosaic_0001>
module attributes {stable_mosaic.version = 11 : i64} {
  func.func @_fused_kernel(%arg0: memref<192x768xbf16, #tpu.memory_space<vmem>>, %arg1: memref<24x192xbf16, #tpu.memory_space<vmem>>, %arg2: memref<24x1xf32, #tpu.memory_space<vmem>>, %arg3: memref<128x256xbf16, #tpu.memory_space<vmem>>, %arg4: memref<1x256xf32, #tpu.memory_space<vmem>>, %arg5: memref<64x256xbf16, #tpu.memory_space<vmem>>, %arg6: memref<768x128xbf16, #tpu.memory_space<vmem>>, %arg7: memref<1x128xf32, #tpu.memory_space<vmem>>, %arg8: memref<128x2xbf16, #tpu.memory_space<vmem>>, %arg9: memref<1x2xf32, #tpu.memory_space<vmem>>, %arg10: memref<2x2xf32, #tpu.memory_space<vmem>>) attributes {dimension_semantics = [], scalar_prefetch = 0 : i64, scratch_operands = 0 : i64, tpu.core_type = #tpu.core_type<tc>} {
    %c0 = arith.constant 0 : index
    %c0_0 = arith.constant 0 : index
    %0 = vector.load %arg1[%c0, %c0_0] : memref<24x192xbf16, #tpu.memory_space<vmem>>, vector<24x192xbf16>
    %c0_1 = arith.constant 0 : index
    %c0_2 = arith.constant 0 : index
    %1 = vector.load %arg0[%c0_1, %c0_2] : memref<192x768xbf16, #tpu.memory_space<vmem>>, vector<192x768xbf16>
    %cst = arith.constant dense<0.000000e+00> : vector<24x768xf32>
    %2 = tpu.matmul %0, %1, %cst {dimension_numbers = #tpu.dot_dimension_numbers<[1], [0], [0], [1], [0, 0, 1, 1], [], []>} : vector<24x192xbf16>, vector<192x768xbf16>, vector<24x768xf32> -> vector<24x768xf32>
    %3 = vector.extract_strided_slice %2 {offsets = [0, 0], sizes = [24, 128], strides = [1, 1]} : vector<24x768xf32> to vector<24x128xf32>
    %4 = vector.extract_strided_slice %2 {offsets = [0, 128], sizes = [24, 128], strides = [1, 1]} : vector<24x768xf32> to vector<24x128xf32>
    %5 = arith.maximumf %3, %4 : vector<24x128xf32>
    %6 = vector.extract_strided_slice %2 {offsets = [0, 256], sizes = [24, 128], strides = [1, 1]} : vector<24x768xf32> to vector<24x128xf32>
    %7 = arith.maximumf %5, %6 : vector<24x128xf32>
    %8 = vector.extract_strided_slice %2 {offsets = [0, 384], sizes = [24, 128], strides = [1, 1]} : vector<24x768xf32> to vector<24x128xf32>
    %9 = arith.maximumf %7, %8 : vector<24x128xf32>
    %10 = vector.extract_strided_slice %2 {offsets = [0, 512], sizes = [24, 128], strides = [1, 1]} : vector<24x768xf32> to vector<24x128xf32>
    %11 = arith.maximumf %9, %10 : vector<24x128xf32>
    %12 = vector.extract_strided_slice %2 {offsets = [0, 640], sizes = [24, 128], strides = [1, 1]} : vector<24x768xf32> to vector<24x128xf32>
    %13 = arith.maximumf %11, %12 : vector<24x128xf32>
    %c0_3 = arith.constant 0 : index
    %c0_4 = arith.constant 0 : index
    %14 = vector.load %arg2[%c0_3, %c0_4] : memref<24x1xf32, #tpu.memory_space<vmem>>, vector<24x1xf32>
    %15 = vector.broadcast %14 : vector<24x1xf32> to vector<24x128xf32>
    %16 = arith.addf %13, %15 : vector<24x128xf32>
    %cst_5 = arith.constant 0.000000e+00 : f32
    %17 = vector.broadcast %cst_5 : f32 to vector<24x128xf32>
    %18 = arith.maximumf %16, %17 : vector<24x128xf32>
    %c0_6 = arith.constant 0 : index
    %c0_7 = arith.constant 0 : index
    %19 = vector.load %arg3[%c0_6, %c0_7] : memref<128x256xbf16, #tpu.memory_space<vmem>>, vector<128x256xbf16>
    %c0_8 = arith.constant 0 : index
    %c0_9 = arith.constant 0 : index
    %20 = vector.load %arg4[%c0_8, %c0_9] : memref<1x256xf32, #tpu.memory_space<vmem>>, vector<1x256xf32>
    %21 = vector.extract_strided_slice %18 {offsets = [0, 0], sizes = [12, 64], strides = [1, 1]} : vector<24x128xf32> to vector<12x64xf32>
    %22 = vector.extract_strided_slice %18 {offsets = [12, 0], sizes = [12, 64], strides = [1, 1]} : vector<24x128xf32> to vector<12x64xf32>
    %23 = tpu.concatenate %21, %22 in 1 : vector<12x64xf32>, vector<12x64xf32> -> vector<12x128xf32>
    %24 = arith.truncf %23 : vector<12x128xf32> to vector<12x128xbf16>
    %cst_10 = arith.constant dense<0.000000e+00> : vector<12x256xf32>
    %25 = tpu.matmul %24, %19, %cst_10 {dimension_numbers = #tpu.dot_dimension_numbers<[1], [0], [0], [1], [0, 0, 1, 1], [], []>} : vector<12x128xbf16>, vector<128x256xbf16>, vector<12x256xf32> -> vector<12x256xf32>
    %26 = vector.broadcast %20 : vector<1x256xf32> to vector<12x256xf32>
    %27 = arith.addf %25, %26 : vector<12x256xf32>
    %28 = vector.extract_strided_slice %18 {offsets = [0, 64], sizes = [12, 64], strides = [1, 1]} : vector<24x128xf32> to vector<12x64xf32>
    %29 = vector.extract_strided_slice %18 {offsets = [12, 64], sizes = [12, 64], strides = [1, 1]} : vector<24x128xf32> to vector<12x64xf32>
    %30 = tpu.concatenate %28, %29 in 1 : vector<12x64xf32>, vector<12x64xf32> -> vector<12x128xf32>
    %31 = arith.truncf %30 : vector<12x128xf32> to vector<12x128xbf16>
    %cst_11 = arith.constant dense<0.000000e+00> : vector<12x256xf32>
    %32 = tpu.matmul %31, %19, %cst_11 {dimension_numbers = #tpu.dot_dimension_numbers<[1], [0], [0], [1], [0, 0, 1, 1], [], []>} : vector<12x128xbf16>, vector<128x256xbf16>, vector<12x256xf32> -> vector<12x256xf32>
    %33 = vector.broadcast %20 : vector<1x256xf32> to vector<12x256xf32>
    %34 = arith.addf %32, %33 : vector<12x256xf32>
    %35 = vector.extract_strided_slice %27 {offsets = [0, 0], sizes = [1, 256], strides = [1, 1]} : vector<12x256xf32> to vector<1x256xf32>
    %36 = vector.extract_strided_slice %34 {offsets = [0, 0], sizes = [1, 256], strides = [1, 1]} : vector<12x256xf32> to vector<1x256xf32>
    %37 = tpu.concatenate %35, %36 in 0 : vector<1x256xf32>, vector<1x256xf32> -> vector<2x256xf32>
    %38 = vector.extract_strided_slice %27 {offsets = [1, 0], sizes = [1, 256], strides = [1, 1]} : vector<12x256xf32> to vector<1x256xf32>
    %39 = vector.extract_strided_slice %34 {offsets = [1, 0], sizes = [1, 256], strides = [1, 1]} : vector<12x256xf32> to vector<1x256xf32>
    %40 = tpu.concatenate %38, %39 in 0 : vector<1x256xf32>, vector<1x256xf32> -> vector<2x256xf32>
    %41 = vector.extract_strided_slice %27 {offsets = [2, 0], sizes = [1, 256], strides = [1, 1]} : vector<12x256xf32> to vector<1x256xf32>
    %42 = vector.extract_strided_slice %34 {offsets = [2, 0], sizes = [1, 256], strides = [1, 1]} : vector<12x256xf32> to vector<1x256xf32>
    %43 = tpu.concatenate %41, %42 in 0 : vector<1x256xf32>, vector<1x256xf32> -> vector<2x256xf32>
    %44 = vector.extract_strided_slice %27 {offsets = [3, 0], sizes = [1, 256], strides = [1, 1]} : vector<12x256xf32> to vector<1x256xf32>
    %45 = vector.extract_strided_slice %34 {offsets = [3, 0], sizes = [1, 256], strides = [1, 1]} : vector<12x256xf32> to vector<1x256xf32>
    %46 = tpu.concatenate %44, %45 in 0 : vector<1x256xf32>, vector<1x256xf32> -> vector<2x256xf32>
    %47 = vector.extract_strided_slice %27 {offsets = [4, 0], sizes = [1, 256], strides = [1, 1]} : vector<12x256xf32> to vector<1x256xf32>
    %48 = vector.extract_strided_slice %34 {offsets = [4, 0], sizes = [1, 256], strides = [1, 1]} : vector<12x256xf32> to vector<1x256xf32>
    %49 = tpu.concatenate %47, %48 in 0 : vector<1x256xf32>, vector<1x256xf32> -> vector<2x256xf32>
    %50 = vector.extract_strided_slice %27 {offsets = [5, 0], sizes = [1, 256], strides = [1, 1]} : vector<12x256xf32> to vector<1x256xf32>
    %51 = vector.extract_strided_slice %34 {offsets = [5, 0], sizes = [1, 256], strides = [1, 1]} : vector<12x256xf32> to vector<1x256xf32>
    %52 = tpu.concatenate %50, %51 in 0 : vector<1x256xf32>, vector<1x256xf32> -> vector<2x256xf32>
    %53 = vector.extract_strided_slice %27 {offsets = [6, 0], sizes = [1, 256], strides = [1, 1]} : vector<12x256xf32> to vector<1x256xf32>
    %54 = vector.extract_strided_slice %34 {offsets = [6, 0], sizes = [1, 256], strides = [1, 1]} : vector<12x256xf32> to vector<1x256xf32>
    %55 = tpu.concatenate %53, %54 in 0 : vector<1x256xf32>, vector<1x256xf32> -> vector<2x256xf32>
    %56 = vector.extract_strided_slice %27 {offsets = [7, 0], sizes = [1, 256], strides = [1, 1]} : vector<12x256xf32> to vector<1x256xf32>
    %57 = vector.extract_strided_slice %34 {offsets = [7, 0], sizes = [1, 256], strides = [1, 1]} : vector<12x256xf32> to vector<1x256xf32>
    %58 = tpu.concatenate %56, %57 in 0 : vector<1x256xf32>, vector<1x256xf32> -> vector<2x256xf32>
    %59 = vector.extract_strided_slice %27 {offsets = [8, 0], sizes = [1, 256], strides = [1, 1]} : vector<12x256xf32> to vector<1x256xf32>
    %60 = vector.extract_strided_slice %34 {offsets = [8, 0], sizes = [1, 256], strides = [1, 1]} : vector<12x256xf32> to vector<1x256xf32>
    %61 = tpu.concatenate %59, %60 in 0 : vector<1x256xf32>, vector<1x256xf32> -> vector<2x256xf32>
    %62 = vector.extract_strided_slice %27 {offsets = [9, 0], sizes = [1, 256], strides = [1, 1]} : vector<12x256xf32> to vector<1x256xf32>
    %63 = vector.extract_strided_slice %34 {offsets = [9, 0], sizes = [1, 256], strides = [1, 1]} : vector<12x256xf32> to vector<1x256xf32>
    %64 = tpu.concatenate %62, %63 in 0 : vector<1x256xf32>, vector<1x256xf32> -> vector<2x256xf32>
    %65 = vector.extract_strided_slice %27 {offsets = [10, 0], sizes = [1, 256], strides = [1, 1]} : vector<12x256xf32> to vector<1x256xf32>
    %66 = vector.extract_strided_slice %34 {offsets = [10, 0], sizes = [1, 256], strides = [1, 1]} : vector<12x256xf32> to vector<1x256xf32>
    %67 = tpu.concatenate %65, %66 in 0 : vector<1x256xf32>, vector<1x256xf32> -> vector<2x256xf32>
    %68 = vector.extract_strided_slice %27 {offsets = [11, 0], sizes = [1, 256], strides = [1, 1]} : vector<12x256xf32> to vector<1x256xf32>
    %69 = vector.extract_strided_slice %34 {offsets = [11, 0], sizes = [1, 256], strides = [1, 1]} : vector<12x256xf32> to vector<1x256xf32>
    %70 = tpu.concatenate %68, %69 in 0 : vector<1x256xf32>, vector<1x256xf32> -> vector<2x256xf32>
    %c0_12 = arith.constant 0 : index
    %c0_13 = arith.constant 0 : index
    %71 = vector.load %arg5[%c0_12, %c0_13] : memref<64x256xbf16, #tpu.memory_space<vmem>>, vector<64x256xbf16>
    %cst_14 = arith.constant 0.000000e+00 : f32
    %72 = vector.broadcast %cst_14 : f32 to vector<2x64xf32>
    %cst_15 = arith.constant 0.000000e+00 : f32
    %73 = vector.broadcast %cst_15 : f32 to vector<2x64xf32>
    %74 = arith.truncf %72 : vector<2x64xf32> to vector<2x64xbf16>
    %cst_16 = arith.constant dense<0.000000e+00> : vector<2x256xf32>
    %75 = tpu.matmul %74, %71, %cst_16 {dimension_numbers = #tpu.dot_dimension_numbers<[1], [0], [0], [1], [0, 0, 1, 1], [], []>} : vector<2x64xbf16>, vector<64x256xbf16>, vector<2x256xf32> -> vector<2x256xf32>
    %76 = arith.addf %37, %75 : vector<2x256xf32>
    %77 = vector.extract_strided_slice %76 {offsets = [0, 0], sizes = [2, 192], strides = [1, 1]} : vector<2x256xf32> to vector<2x192xf32>
    %78 = arith.negf %77 : vector<2x192xf32>
    %79 = math.exp %78 : vector<2x192xf32>
    %cst_17 = arith.constant 1.000000e+00 : f32
    %80 = vector.broadcast %cst_17 : f32 to vector<2x192xf32>
    %81 = arith.addf %80, %79 : vector<2x192xf32>
    %82 = arith.divf %80, %81 : vector<2x192xf32>
    %83 = vector.extract_strided_slice %76 {offsets = [0, 192], sizes = [2, 64], strides = [1, 1]} : vector<2x256xf32> to vector<2x64xf32>
    %84 = math.tanh %83 : vector<2x64xf32>
    %85 = vector.extract_strided_slice %82 {offsets = [0, 0], sizes = [2, 64], strides = [1, 1]} : vector<2x192xf32> to vector<2x64xf32>
    %86 = vector.extract_strided_slice %82 {offsets = [0, 64], sizes = [2, 64], strides = [1, 1]} : vector<2x192xf32> to vector<2x64xf32>
    %87 = vector.extract_strided_slice %82 {offsets = [0, 128], sizes = [2, 64], strides = [1, 1]} : vector<2x192xf32> to vector<2x64xf32>
    %88 = arith.mulf %86, %73 : vector<2x64xf32>
    %89 = arith.mulf %85, %84 : vector<2x64xf32>
    %90 = arith.addf %88, %89 : vector<2x64xf32>
    %91 = math.tanh %90 : vector<2x64xf32>
    %92 = arith.mulf %87, %91 : vector<2x64xf32>
    %93 = arith.truncf %92 : vector<2x64xf32> to vector<2x64xbf16>
    %cst_18 = arith.constant dense<0.000000e+00> : vector<2x256xf32>
    %94 = tpu.matmul %93, %71, %cst_18 {dimension_numbers = #tpu.dot_dimension_numbers<[1], [0], [0], [1], [0, 0, 1, 1], [], []>} : vector<2x64xbf16>, vector<64x256xbf16>, vector<2x256xf32> -> vector<2x256xf32>
    %95 = arith.addf %40, %94 : vector<2x256xf32>
    %96 = vector.extract_strided_slice %95 {offsets = [0, 0], sizes = [2, 192], strides = [1, 1]} : vector<2x256xf32> to vector<2x192xf32>
    %97 = arith.negf %96 : vector<2x192xf32>
    %98 = math.exp %97 : vector<2x192xf32>
    %cst_19 = arith.constant 1.000000e+00 : f32
    %99 = vector.broadcast %cst_19 : f32 to vector<2x192xf32>
    %100 = arith.addf %99, %98 : vector<2x192xf32>
    %101 = arith.divf %99, %100 : vector<2x192xf32>
    %102 = vector.extract_strided_slice %95 {offsets = [0, 192], sizes = [2, 64], strides = [1, 1]} : vector<2x256xf32> to vector<2x64xf32>
    %103 = math.tanh %102 : vector<2x64xf32>
    %104 = vector.extract_strided_slice %101 {offsets = [0, 0], sizes = [2, 64], strides = [1, 1]} : vector<2x192xf32> to vector<2x64xf32>
    %105 = vector.extract_strided_slice %101 {offsets = [0, 64], sizes = [2, 64], strides = [1, 1]} : vector<2x192xf32> to vector<2x64xf32>
    %106 = vector.extract_strided_slice %101 {offsets = [0, 128], sizes = [2, 64], strides = [1, 1]} : vector<2x192xf32> to vector<2x64xf32>
    %107 = arith.mulf %105, %90 : vector<2x64xf32>
    %108 = arith.mulf %104, %103 : vector<2x64xf32>
    %109 = arith.addf %107, %108 : vector<2x64xf32>
    %110 = math.tanh %109 : vector<2x64xf32>
    %111 = arith.mulf %106, %110 : vector<2x64xf32>
    %112 = arith.truncf %111 : vector<2x64xf32> to vector<2x64xbf16>
    %cst_20 = arith.constant dense<0.000000e+00> : vector<2x256xf32>
    %113 = tpu.matmul %112, %71, %cst_20 {dimension_numbers = #tpu.dot_dimension_numbers<[1], [0], [0], [1], [0, 0, 1, 1], [], []>} : vector<2x64xbf16>, vector<64x256xbf16>, vector<2x256xf32> -> vector<2x256xf32>
    %114 = arith.addf %43, %113 : vector<2x256xf32>
    %115 = vector.extract_strided_slice %114 {offsets = [0, 0], sizes = [2, 192], strides = [1, 1]} : vector<2x256xf32> to vector<2x192xf32>
    %116 = arith.negf %115 : vector<2x192xf32>
    %117 = math.exp %116 : vector<2x192xf32>
    %cst_21 = arith.constant 1.000000e+00 : f32
    %118 = vector.broadcast %cst_21 : f32 to vector<2x192xf32>
    %119 = arith.addf %118, %117 : vector<2x192xf32>
    %120 = arith.divf %118, %119 : vector<2x192xf32>
    %121 = vector.extract_strided_slice %114 {offsets = [0, 192], sizes = [2, 64], strides = [1, 1]} : vector<2x256xf32> to vector<2x64xf32>
    %122 = math.tanh %121 : vector<2x64xf32>
    %123 = vector.extract_strided_slice %120 {offsets = [0, 0], sizes = [2, 64], strides = [1, 1]} : vector<2x192xf32> to vector<2x64xf32>
    %124 = vector.extract_strided_slice %120 {offsets = [0, 64], sizes = [2, 64], strides = [1, 1]} : vector<2x192xf32> to vector<2x64xf32>
    %125 = vector.extract_strided_slice %120 {offsets = [0, 128], sizes = [2, 64], strides = [1, 1]} : vector<2x192xf32> to vector<2x64xf32>
    %126 = arith.mulf %124, %109 : vector<2x64xf32>
    %127 = arith.mulf %123, %122 : vector<2x64xf32>
    %128 = arith.addf %126, %127 : vector<2x64xf32>
    %129 = math.tanh %128 : vector<2x64xf32>
    %130 = arith.mulf %125, %129 : vector<2x64xf32>
    %131 = arith.truncf %130 : vector<2x64xf32> to vector<2x64xbf16>
    %cst_22 = arith.constant dense<0.000000e+00> : vector<2x256xf32>
    %132 = tpu.matmul %131, %71, %cst_22 {dimension_numbers = #tpu.dot_dimension_numbers<[1], [0], [0], [1], [0, 0, 1, 1], [], []>} : vector<2x64xbf16>, vector<64x256xbf16>, vector<2x256xf32> -> vector<2x256xf32>
    %133 = arith.addf %46, %132 : vector<2x256xf32>
    %134 = vector.extract_strided_slice %133 {offsets = [0, 0], sizes = [2, 192], strides = [1, 1]} : vector<2x256xf32> to vector<2x192xf32>
    %135 = arith.negf %134 : vector<2x192xf32>
    %136 = math.exp %135 : vector<2x192xf32>
    %cst_23 = arith.constant 1.000000e+00 : f32
    %137 = vector.broadcast %cst_23 : f32 to vector<2x192xf32>
    %138 = arith.addf %137, %136 : vector<2x192xf32>
    %139 = arith.divf %137, %138 : vector<2x192xf32>
    %140 = vector.extract_strided_slice %133 {offsets = [0, 192], sizes = [2, 64], strides = [1, 1]} : vector<2x256xf32> to vector<2x64xf32>
    %141 = math.tanh %140 : vector<2x64xf32>
    %142 = vector.extract_strided_slice %139 {offsets = [0, 0], sizes = [2, 64], strides = [1, 1]} : vector<2x192xf32> to vector<2x64xf32>
    %143 = vector.extract_strided_slice %139 {offsets = [0, 64], sizes = [2, 64], strides = [1, 1]} : vector<2x192xf32> to vector<2x64xf32>
    %144 = vector.extract_strided_slice %139 {offsets = [0, 128], sizes = [2, 64], strides = [1, 1]} : vector<2x192xf32> to vector<2x64xf32>
    %145 = arith.mulf %143, %128 : vector<2x64xf32>
    %146 = arith.mulf %142, %141 : vector<2x64xf32>
    %147 = arith.addf %145, %146 : vector<2x64xf32>
    %148 = math.tanh %147 : vector<2x64xf32>
    %149 = arith.mulf %144, %148 : vector<2x64xf32>
    %150 = arith.truncf %149 : vector<2x64xf32> to vector<2x64xbf16>
    %cst_24 = arith.constant dense<0.000000e+00> : vector<2x256xf32>
    %151 = tpu.matmul %150, %71, %cst_24 {dimension_numbers = #tpu.dot_dimension_numbers<[1], [0], [0], [1], [0, 0, 1, 1], [], []>} : vector<2x64xbf16>, vector<64x256xbf16>, vector<2x256xf32> -> vector<2x256xf32>
    %152 = arith.addf %49, %151 : vector<2x256xf32>
    %153 = vector.extract_strided_slice %152 {offsets = [0, 0], sizes = [2, 192], strides = [1, 1]} : vector<2x256xf32> to vector<2x192xf32>
    %154 = arith.negf %153 : vector<2x192xf32>
    %155 = math.exp %154 : vector<2x192xf32>
    %cst_25 = arith.constant 1.000000e+00 : f32
    %156 = vector.broadcast %cst_25 : f32 to vector<2x192xf32>
    %157 = arith.addf %156, %155 : vector<2x192xf32>
    %158 = arith.divf %156, %157 : vector<2x192xf32>
    %159 = vector.extract_strided_slice %152 {offsets = [0, 192], sizes = [2, 64], strides = [1, 1]} : vector<2x256xf32> to vector<2x64xf32>
    %160 = math.tanh %159 : vector<2x64xf32>
    %161 = vector.extract_strided_slice %158 {offsets = [0, 0], sizes = [2, 64], strides = [1, 1]} : vector<2x192xf32> to vector<2x64xf32>
    %162 = vector.extract_strided_slice %158 {offsets = [0, 64], sizes = [2, 64], strides = [1, 1]} : vector<2x192xf32> to vector<2x64xf32>
    %163 = vector.extract_strided_slice %158 {offsets = [0, 128], sizes = [2, 64], strides = [1, 1]} : vector<2x192xf32> to vector<2x64xf32>
    %164 = arith.mulf %162, %147 : vector<2x64xf32>
    %165 = arith.mulf %161, %160 : vector<2x64xf32>
    %166 = arith.addf %164, %165 : vector<2x64xf32>
    %167 = math.tanh %166 : vector<2x64xf32>
    %168 = arith.mulf %163, %167 : vector<2x64xf32>
    %169 = arith.truncf %168 : vector<2x64xf32> to vector<2x64xbf16>
    %cst_26 = arith.constant dense<0.000000e+00> : vector<2x256xf32>
    %170 = tpu.matmul %169, %71, %cst_26 {dimension_numbers = #tpu.dot_dimension_numbers<[1], [0], [0], [1], [0, 0, 1, 1], [], []>} : vector<2x64xbf16>, vector<64x256xbf16>, vector<2x256xf32> -> vector<2x256xf32>
    %171 = arith.addf %52, %170 : vector<2x256xf32>
    %172 = vector.extract_strided_slice %171 {offsets = [0, 0], sizes = [2, 192], strides = [1, 1]} : vector<2x256xf32> to vector<2x192xf32>
    %173 = arith.negf %172 : vector<2x192xf32>
    %174 = math.exp %173 : vector<2x192xf32>
    %cst_27 = arith.constant 1.000000e+00 : f32
    %175 = vector.broadcast %cst_27 : f32 to vector<2x192xf32>
    %176 = arith.addf %175, %174 : vector<2x192xf32>
    %177 = arith.divf %175, %176 : vector<2x192xf32>
    %178 = vector.extract_strided_slice %171 {offsets = [0, 192], sizes = [2, 64], strides = [1, 1]} : vector<2x256xf32> to vector<2x64xf32>
    %179 = math.tanh %178 : vector<2x64xf32>
    %180 = vector.extract_strided_slice %177 {offsets = [0, 0], sizes = [2, 64], strides = [1, 1]} : vector<2x192xf32> to vector<2x64xf32>
    %181 = vector.extract_strided_slice %177 {offsets = [0, 64], sizes = [2, 64], strides = [1, 1]} : vector<2x192xf32> to vector<2x64xf32>
    %182 = vector.extract_strided_slice %177 {offsets = [0, 128], sizes = [2, 64], strides = [1, 1]} : vector<2x192xf32> to vector<2x64xf32>
    %183 = arith.mulf %181, %166 : vector<2x64xf32>
    %184 = arith.mulf %180, %179 : vector<2x64xf32>
    %185 = arith.addf %183, %184 : vector<2x64xf32>
    %186 = math.tanh %185 : vector<2x64xf32>
    %187 = arith.mulf %182, %186 : vector<2x64xf32>
    %188 = arith.truncf %187 : vector<2x64xf32> to vector<2x64xbf16>
    %cst_28 = arith.constant dense<0.000000e+00> : vector<2x256xf32>
    %189 = tpu.matmul %188, %71, %cst_28 {dimension_numbers = #tpu.dot_dimension_numbers<[1], [0], [0], [1], [0, 0, 1, 1], [], []>} : vector<2x64xbf16>, vector<64x256xbf16>, vector<2x256xf32> -> vector<2x256xf32>
    %190 = arith.addf %55, %189 : vector<2x256xf32>
    %191 = vector.extract_strided_slice %190 {offsets = [0, 0], sizes = [2, 192], strides = [1, 1]} : vector<2x256xf32> to vector<2x192xf32>
    %192 = arith.negf %191 : vector<2x192xf32>
    %193 = math.exp %192 : vector<2x192xf32>
    %cst_29 = arith.constant 1.000000e+00 : f32
    %194 = vector.broadcast %cst_29 : f32 to vector<2x192xf32>
    %195 = arith.addf %194, %193 : vector<2x192xf32>
    %196 = arith.divf %194, %195 : vector<2x192xf32>
    %197 = vector.extract_strided_slice %190 {offsets = [0, 192], sizes = [2, 64], strides = [1, 1]} : vector<2x256xf32> to vector<2x64xf32>
    %198 = math.tanh %197 : vector<2x64xf32>
    %199 = vector.extract_strided_slice %196 {offsets = [0, 0], sizes = [2, 64], strides = [1, 1]} : vector<2x192xf32> to vector<2x64xf32>
    %200 = vector.extract_strided_slice %196 {offsets = [0, 64], sizes = [2, 64], strides = [1, 1]} : vector<2x192xf32> to vector<2x64xf32>
    %201 = vector.extract_strided_slice %196 {offsets = [0, 128], sizes = [2, 64], strides = [1, 1]} : vector<2x192xf32> to vector<2x64xf32>
    %202 = arith.mulf %200, %185 : vector<2x64xf32>
    %203 = arith.mulf %199, %198 : vector<2x64xf32>
    %204 = arith.addf %202, %203 : vector<2x64xf32>
    %205 = math.tanh %204 : vector<2x64xf32>
    %206 = arith.mulf %201, %205 : vector<2x64xf32>
    %207 = arith.truncf %206 : vector<2x64xf32> to vector<2x64xbf16>
    %cst_30 = arith.constant dense<0.000000e+00> : vector<2x256xf32>
    %208 = tpu.matmul %207, %71, %cst_30 {dimension_numbers = #tpu.dot_dimension_numbers<[1], [0], [0], [1], [0, 0, 1, 1], [], []>} : vector<2x64xbf16>, vector<64x256xbf16>, vector<2x256xf32> -> vector<2x256xf32>
    %209 = arith.addf %58, %208 : vector<2x256xf32>
    %210 = vector.extract_strided_slice %209 {offsets = [0, 0], sizes = [2, 192], strides = [1, 1]} : vector<2x256xf32> to vector<2x192xf32>
    %211 = arith.negf %210 : vector<2x192xf32>
    %212 = math.exp %211 : vector<2x192xf32>
    %cst_31 = arith.constant 1.000000e+00 : f32
    %213 = vector.broadcast %cst_31 : f32 to vector<2x192xf32>
    %214 = arith.addf %213, %212 : vector<2x192xf32>
    %215 = arith.divf %213, %214 : vector<2x192xf32>
    %216 = vector.extract_strided_slice %209 {offsets = [0, 192], sizes = [2, 64], strides = [1, 1]} : vector<2x256xf32> to vector<2x64xf32>
    %217 = math.tanh %216 : vector<2x64xf32>
    %218 = vector.extract_strided_slice %215 {offsets = [0, 0], sizes = [2, 64], strides = [1, 1]} : vector<2x192xf32> to vector<2x64xf32>
    %219 = vector.extract_strided_slice %215 {offsets = [0, 64], sizes = [2, 64], strides = [1, 1]} : vector<2x192xf32> to vector<2x64xf32>
    %220 = vector.extract_strided_slice %215 {offsets = [0, 128], sizes = [2, 64], strides = [1, 1]} : vector<2x192xf32> to vector<2x64xf32>
    %221 = arith.mulf %219, %204 : vector<2x64xf32>
    %222 = arith.mulf %218, %217 : vector<2x64xf32>
    %223 = arith.addf %221, %222 : vector<2x64xf32>
    %224 = math.tanh %223 : vector<2x64xf32>
    %225 = arith.mulf %220, %224 : vector<2x64xf32>
    %226 = arith.truncf %225 : vector<2x64xf32> to vector<2x64xbf16>
    %cst_32 = arith.constant dense<0.000000e+00> : vector<2x256xf32>
    %227 = tpu.matmul %226, %71, %cst_32 {dimension_numbers = #tpu.dot_dimension_numbers<[1], [0], [0], [1], [0, 0, 1, 1], [], []>} : vector<2x64xbf16>, vector<64x256xbf16>, vector<2x256xf32> -> vector<2x256xf32>
    %228 = arith.addf %61, %227 : vector<2x256xf32>
    %229 = vector.extract_strided_slice %228 {offsets = [0, 0], sizes = [2, 192], strides = [1, 1]} : vector<2x256xf32> to vector<2x192xf32>
    %230 = arith.negf %229 : vector<2x192xf32>
    %231 = math.exp %230 : vector<2x192xf32>
    %cst_33 = arith.constant 1.000000e+00 : f32
    %232 = vector.broadcast %cst_33 : f32 to vector<2x192xf32>
    %233 = arith.addf %232, %231 : vector<2x192xf32>
    %234 = arith.divf %232, %233 : vector<2x192xf32>
    %235 = vector.extract_strided_slice %228 {offsets = [0, 192], sizes = [2, 64], strides = [1, 1]} : vector<2x256xf32> to vector<2x64xf32>
    %236 = math.tanh %235 : vector<2x64xf32>
    %237 = vector.extract_strided_slice %234 {offsets = [0, 0], sizes = [2, 64], strides = [1, 1]} : vector<2x192xf32> to vector<2x64xf32>
    %238 = vector.extract_strided_slice %234 {offsets = [0, 64], sizes = [2, 64], strides = [1, 1]} : vector<2x192xf32> to vector<2x64xf32>
    %239 = vector.extract_strided_slice %234 {offsets = [0, 128], sizes = [2, 64], strides = [1, 1]} : vector<2x192xf32> to vector<2x64xf32>
    %240 = arith.mulf %238, %223 : vector<2x64xf32>
    %241 = arith.mulf %237, %236 : vector<2x64xf32>
    %242 = arith.addf %240, %241 : vector<2x64xf32>
    %243 = math.tanh %242 : vector<2x64xf32>
    %244 = arith.mulf %239, %243 : vector<2x64xf32>
    %245 = arith.truncf %244 : vector<2x64xf32> to vector<2x64xbf16>
    %cst_34 = arith.constant dense<0.000000e+00> : vector<2x256xf32>
    %246 = tpu.matmul %245, %71, %cst_34 {dimension_numbers = #tpu.dot_dimension_numbers<[1], [0], [0], [1], [0, 0, 1, 1], [], []>} : vector<2x64xbf16>, vector<64x256xbf16>, vector<2x256xf32> -> vector<2x256xf32>
    %247 = arith.addf %64, %246 : vector<2x256xf32>
    %248 = vector.extract_strided_slice %247 {offsets = [0, 0], sizes = [2, 192], strides = [1, 1]} : vector<2x256xf32> to vector<2x192xf32>
    %249 = arith.negf %248 : vector<2x192xf32>
    %250 = math.exp %249 : vector<2x192xf32>
    %cst_35 = arith.constant 1.000000e+00 : f32
    %251 = vector.broadcast %cst_35 : f32 to vector<2x192xf32>
    %252 = arith.addf %251, %250 : vector<2x192xf32>
    %253 = arith.divf %251, %252 : vector<2x192xf32>
    %254 = vector.extract_strided_slice %247 {offsets = [0, 192], sizes = [2, 64], strides = [1, 1]} : vector<2x256xf32> to vector<2x64xf32>
    %255 = math.tanh %254 : vector<2x64xf32>
    %256 = vector.extract_strided_slice %253 {offsets = [0, 0], sizes = [2, 64], strides = [1, 1]} : vector<2x192xf32> to vector<2x64xf32>
    %257 = vector.extract_strided_slice %253 {offsets = [0, 64], sizes = [2, 64], strides = [1, 1]} : vector<2x192xf32> to vector<2x64xf32>
    %258 = vector.extract_strided_slice %253 {offsets = [0, 128], sizes = [2, 64], strides = [1, 1]} : vector<2x192xf32> to vector<2x64xf32>
    %259 = arith.mulf %257, %242 : vector<2x64xf32>
    %260 = arith.mulf %256, %255 : vector<2x64xf32>
    %261 = arith.addf %259, %260 : vector<2x64xf32>
    %262 = math.tanh %261 : vector<2x64xf32>
    %263 = arith.mulf %258, %262 : vector<2x64xf32>
    %264 = arith.truncf %263 : vector<2x64xf32> to vector<2x64xbf16>
    %cst_36 = arith.constant dense<0.000000e+00> : vector<2x256xf32>
    %265 = tpu.matmul %264, %71, %cst_36 {dimension_numbers = #tpu.dot_dimension_numbers<[1], [0], [0], [1], [0, 0, 1, 1], [], []>} : vector<2x64xbf16>, vector<64x256xbf16>, vector<2x256xf32> -> vector<2x256xf32>
    %266 = arith.addf %67, %265 : vector<2x256xf32>
    %267 = vector.extract_strided_slice %266 {offsets = [0, 0], sizes = [2, 192], strides = [1, 1]} : vector<2x256xf32> to vector<2x192xf32>
    %268 = arith.negf %267 : vector<2x192xf32>
    %269 = math.exp %268 : vector<2x192xf32>
    %cst_37 = arith.constant 1.000000e+00 : f32
    %270 = vector.broadcast %cst_37 : f32 to vector<2x192xf32>
    %271 = arith.addf %270, %269 : vector<2x192xf32>
    %272 = arith.divf %270, %271 : vector<2x192xf32>
    %273 = vector.extract_strided_slice %266 {offsets = [0, 192], sizes = [2, 64], strides = [1, 1]} : vector<2x256xf32> to vector<2x64xf32>
    %274 = math.tanh %273 : vector<2x64xf32>
    %275 = vector.extract_strided_slice %272 {offsets = [0, 0], sizes = [2, 64], strides = [1, 1]} : vector<2x192xf32> to vector<2x64xf32>
    %276 = vector.extract_strided_slice %272 {offsets = [0, 64], sizes = [2, 64], strides = [1, 1]} : vector<2x192xf32> to vector<2x64xf32>
    %277 = vector.extract_strided_slice %272 {offsets = [0, 128], sizes = [2, 64], strides = [1, 1]} : vector<2x192xf32> to vector<2x64xf32>
    %278 = arith.mulf %276, %261 : vector<2x64xf32>
    %279 = arith.mulf %275, %274 : vector<2x64xf32>
    %280 = arith.addf %278, %279 : vector<2x64xf32>
    %281 = math.tanh %280 : vector<2x64xf32>
    %282 = arith.mulf %277, %281 : vector<2x64xf32>
    %283 = arith.truncf %282 : vector<2x64xf32> to vector<2x64xbf16>
    %cst_38 = arith.constant dense<0.000000e+00> : vector<2x256xf32>
    %284 = tpu.matmul %283, %71, %cst_38 {dimension_numbers = #tpu.dot_dimension_numbers<[1], [0], [0], [1], [0, 0, 1, 1], [], []>} : vector<2x64xbf16>, vector<64x256xbf16>, vector<2x256xf32> -> vector<2x256xf32>
    %285 = arith.addf %70, %284 : vector<2x256xf32>
    %286 = vector.extract_strided_slice %285 {offsets = [0, 0], sizes = [2, 192], strides = [1, 1]} : vector<2x256xf32> to vector<2x192xf32>
    %287 = arith.negf %286 : vector<2x192xf32>
    %288 = math.exp %287 : vector<2x192xf32>
    %cst_39 = arith.constant 1.000000e+00 : f32
    %289 = vector.broadcast %cst_39 : f32 to vector<2x192xf32>
    %290 = arith.addf %289, %288 : vector<2x192xf32>
    %291 = arith.divf %289, %290 : vector<2x192xf32>
    %292 = vector.extract_strided_slice %285 {offsets = [0, 192], sizes = [2, 64], strides = [1, 1]} : vector<2x256xf32> to vector<2x64xf32>
    %293 = math.tanh %292 : vector<2x64xf32>
    %294 = vector.extract_strided_slice %291 {offsets = [0, 0], sizes = [2, 64], strides = [1, 1]} : vector<2x192xf32> to vector<2x64xf32>
    %295 = vector.extract_strided_slice %291 {offsets = [0, 64], sizes = [2, 64], strides = [1, 1]} : vector<2x192xf32> to vector<2x64xf32>
    %296 = vector.extract_strided_slice %291 {offsets = [0, 128], sizes = [2, 64], strides = [1, 1]} : vector<2x192xf32> to vector<2x64xf32>
    %297 = arith.mulf %295, %280 : vector<2x64xf32>
    %298 = arith.mulf %294, %293 : vector<2x64xf32>
    %299 = arith.addf %297, %298 : vector<2x64xf32>
    %300 = math.tanh %299 : vector<2x64xf32>
    %301 = arith.mulf %296, %300 : vector<2x64xf32>
    %302 = tpu.concatenate %92, %111, %130, %149, %168, %187, %206, %225, %244, %263, %282, %301 in 1 : vector<2x64xf32>, vector<2x64xf32>, vector<2x64xf32>, vector<2x64xf32>, vector<2x64xf32>, vector<2x64xf32>, vector<2x64xf32>, vector<2x64xf32>, vector<2x64xf32>, vector<2x64xf32>, vector<2x64xf32>, vector<2x64xf32> -> vector<2x768xf32>
    %303 = arith.truncf %302 : vector<2x768xf32> to vector<2x768xbf16>
    %c0_40 = arith.constant 0 : index
    %c0_41 = arith.constant 0 : index
    %304 = vector.load %arg6[%c0_40, %c0_41] : memref<768x128xbf16, #tpu.memory_space<vmem>>, vector<768x128xbf16>
    %cst_42 = arith.constant dense<0.000000e+00> : vector<2x128xf32>
    %305 = tpu.matmul %303, %304, %cst_42 {dimension_numbers = #tpu.dot_dimension_numbers<[1], [0], [0], [1], [0, 0, 1, 1], [], []>} : vector<2x768xbf16>, vector<768x128xbf16>, vector<2x128xf32> -> vector<2x128xf32>
    %c0_43 = arith.constant 0 : index
    %c0_44 = arith.constant 0 : index
    %306 = vector.load %arg7[%c0_43, %c0_44] : memref<1x128xf32, #tpu.memory_space<vmem>>, vector<1x128xf32>
    %307 = vector.broadcast %306 : vector<1x128xf32> to vector<2x128xf32>
    %308 = arith.addf %305, %307 : vector<2x128xf32>
    %cst_45 = arith.constant 0.000000e+00 : f32
    %309 = vector.broadcast %cst_45 : f32 to vector<2x128xf32>
    %310 = arith.maximumf %308, %309 : vector<2x128xf32>
    %311 = arith.truncf %310 : vector<2x128xf32> to vector<2x128xbf16>
    %c0_46 = arith.constant 0 : index
    %c0_47 = arith.constant 0 : index
    %312 = vector.load %arg8[%c0_46, %c0_47] : memref<128x2xbf16, #tpu.memory_space<vmem>>, vector<128x2xbf16>
    %cst_48 = arith.constant dense<0.000000e+00> : vector<2x2xf32>
    %313 = tpu.matmul %311, %312, %cst_48 {dimension_numbers = #tpu.dot_dimension_numbers<[1], [0], [0], [1], [0, 0, 1, 1], [], []>} : vector<2x128xbf16>, vector<128x2xbf16>, vector<2x2xf32> -> vector<2x2xf32>
    %c0_49 = arith.constant 0 : index
    %c0_50 = arith.constant 0 : index
    %314 = vector.load %arg9[%c0_49, %c0_50] : memref<1x2xf32, #tpu.memory_space<vmem>>, vector<1x2xf32>
    %315 = vector.broadcast %314 : vector<1x2xf32> to vector<2x2xf32>
    %316 = arith.addf %313, %315 : vector<2x2xf32>
    %cst_51 = arith.constant dense<0xFF800000> : vector<2xf32>
    %317 = vector.multi_reduction <maximumf>, %316, %cst_51 [1] : vector<2x2xf32> to vector<2xf32>
    %318 = vector.shape_cast %317 : vector<2xf32> to vector<2x1xf32>
    %319 = vector.broadcast %318 : vector<2x1xf32> to vector<2x2xf32>
    %320 = arith.subf %316, %319 : vector<2x2xf32>
    %321 = math.exp %320 : vector<2x2xf32>
    %cst_52 = arith.constant dense<0.000000e+00> : vector<2xf32>
    %322 = vector.multi_reduction <add>, %321, %cst_52 [1] : vector<2x2xf32> to vector<2xf32>
    %323 = vector.shape_cast %322 : vector<2xf32> to vector<2x1xf32>
    %324 = vector.broadcast %323 : vector<2x1xf32> to vector<2x2xf32>
    %325 = arith.divf %321, %324 : vector<2x2xf32>
    %c0_53 = arith.constant 0 : index
    %c0_54 = arith.constant 0 : index
    %326 = vector.load %arg10[%c0_53, %c0_54] : memref<2x2xf32, #tpu.memory_space<vmem>>, vector<2x2xf32>
    tpu.vector_store %arg10[%c0_53, %c0_54], %325 {strides = array<i32>} : memref<2x2xf32, #tpu.memory_space<vmem>>, vector<2x2xf32>,
    return
  }
}

</mosaic_0001>

<llo_original>
// kernel: _forward.1
$region0: #{_forward.1}
  #allocation0 [shape = 'u32[]', space=smem, size = 0x4, offset = 0x4, fixed_abs, tag = 'smem constant byte address 0x4 - core index']
  #allocation1 [shape = 'u32[72,128]{1,0:T(1,128)}', space=vmem, size = 0x9000, scoped, tag = 'internal scratch']
  %s0 = inlined_call_operand.vmem [shape: bf16[192,768], index: 0, kind: input, shape index: {}]
  %s1 = inlined_call_operand.vmem [shape: bf16[24,192], index: 1, kind: input, shape index: {}]
  %s2 = inlined_call_operand.vmem [shape: f32[24,1], index: 2, kind: input, shape index: {}]
  %s3 = inlined_call_operand.vmem [shape: bf16[128,256], index: 3, kind: input, shape index: {}]
  %s4 = inlined_call_operand.vmem [shape: f32[1,256], index: 4, kind: input, shape index: {}]
  %s5 = inlined_call_operand.vmem [shape: bf16[64,256], index: 5, kind: input, shape index: {}]
  %s6 = inlined_call_operand.vmem [shape: bf16[768,128], index: 6, kind: input, shape index: {}]
  %s7 = inlined_call_operand.vmem [shape: f32[1,128], index: 7, kind: input, shape index: {}]
  %s8 = inlined_call_operand.vmem [shape: bf16[128,2], index: 8, kind: input, shape index: {}]
  %s9 = inlined_call_operand.vmem [shape: f32[1,2], index: 9, kind: input, shape index: {}]
  %s10 = inlined_call_operand.hbm [shape: f32[2,2], index: 10, kind: output, shape index: {}]
  %s11 = sld [smem:[#allocation0]]
  $region50: #{_forward.1} parent=0
    _
  %s13 = ssub.s32 1, %s11
  %s14 = scalar_select 0, %s13, %s11
  $region1: #{_forward.1} parent=0
    #allocation2 [shape = 'u8[1024]{0}', space=vmem, size = 0x400, scoped, tag = 'output window, operand 0, single buffered']
    #allocation3 [shape = 's32[1]{0}', space=sflag, size = 0x4, scoped, tag = 'scoped memory for _forward.1']
    %15 = vsyncpa [#allocation3], 0
    // Predicated region
    $region2: #{_forward.1} parent=1 // pred_check
      _
    $region3: #{_forward.1} parent=1 // pred_check_branch
      %17 = sbr.rel (0) target = $region5
    $region4: #{_forward.1} parent=1 // pred_region
      _
    $region5: #{_forward.1} parent=1 // pred_fallthru
      _
    // Predicated region
    $region6: #{_forward.1} parent=1 // pred_check
      _
    $region7: #{_forward.1} parent=1 // pred_check_branch
      %19 = sbr.rel (0) target = $region9
    $region8: #{_forward.1} parent=1 // pred_region
      _
    $region9: #{_forward.1} parent=1 // pred_fallthru
      _
    // Predicated region
    $region10: #{_forward.1} parent=1 // pred_check
      _
    $region11: #{_forward.1} parent=1 // pred_check_branch
      %21 = sbr.rel (0) target = $region13
    $region12: #{_forward.1} parent=1 // pred_region
      _
    $region13: #{_forward.1} parent=1 // pred_fallthru
      _
    // Predicated region
    $region14: #{_forward.1} parent=1 // pred_check
      _
    $region15: #{_forward.1} parent=1 // pred_check_branch
      %23 = sbr.rel (0) target = $region17
    $region16: #{_forward.1} parent=1 // pred_region
      _
    $region17: #{_forward.1} parent=1 // pred_fallthru
      _
    // Predicated region
    $region18: #{_forward.1} parent=1 // pred_check
      _
    $region19: #{_forward.1} parent=1 // pred_check_branch
      %25 = sbr.rel (0) target = $region21
    $region20: #{_forward.1} parent=1 // pred_region
      _
    $region21: #{_forward.1} parent=1 // pred_fallthru
      _
    // Predicated region
    $region22: #{_forward.1} parent=1 // pred_check
      _
    $region23: #{_forward.1} parent=1 // pred_check_branch
      %27 = sbr.rel (0) target = $region25
    $region24: #{_forward.1} parent=1 // pred_region
      _
    $region25: #{_forward.1} parent=1 // pred_fallthru
      _
    // Predicated region
    $region26: #{_forward.1} parent=1 // pred_check
      _
    $region27: #{_forward.1} parent=1 // pred_check_branch
      %29 = sbr.rel (0) target = $region29
    $region28: #{_forward.1} parent=1 // pred_region
      _
    $region29: #{_forward.1} parent=1 // pred_fallthru
      _
    // Predicated region
    $region30: #{_forward.1} parent=1 // pred_check
      _
    $region31: #{_forward.1} parent=1 // pred_check_branch
      %31 = sbr.rel (0) target = $region33
    $region32: #{_forward.1} parent=1 // pred_region
      _
    $region33: #{_forward.1} parent=1 // pred_fallthru
      _
    // Predicated region
    $region34: #{_forward.1} parent=1 // pred_check
      _
    $region35: #{_forward.1} parent=1 // pred_check_branch
      %33 = sbr.rel (0) target = $region37
    $region36: #{_forward.1} parent=1 // pred_region
      _
    $region37: #{_forward.1} parent=1 // pred_fallthru
      _
    // Predicated region
    $region38: #{_forward.1} parent=1 // pred_check
      _
    $region39: #{_forward.1} parent=1 // pred_check_branch
      %35 = sbr.rel (0) target = $region41
    $region40: #{_forward.1} parent=1 // pred_region
      _
    $region41: #{_forward.1} parent=1 // pred_fallthru
      _
    %v37 = vld [vmem:[%s1] sm:$0xff]
    %v38 = vld [vmem:[%s1 + $0x8] sm:$0xff]
    %v39 = vld [vmem:[%s1 + $0x10] sm:$0xff]
    %v40 = vld [vmem:[%s0] sm:$0xff]
    %v41 = vld [vmem:[%s0 + $0x8] sm:$0xff]
    %v42 = vld [vmem:[%s0 + $0x10] sm:$0xff]
    %v43 = vld [vmem:[%s0 + $0x18] sm:$0xff]
    %v44 = vld [vmem:[%s0 + $0x20] sm:$0xff]
    %v45 = vld [vmem:[%s0 + $0x28] sm:$0xff]
    %v46 = vld [vmem:[%s0 + $0x30] sm:$0xff]
    %v47 = vld [vmem:[%s0 + $0x38] sm:$0xff]
    %v48 = vld [vmem:[%s0 + $0x40] sm:$0xff]
    %v49 = vld [vmem:[%s0 + $0x48] sm:$0xff]
    %v50 = vld [vmem:[%s0 + $0x50] sm:$0xff]
    %v51 = vld [vmem:[%s0 + $0x58] sm:$0xff]
    %v52 = vld [vmem:[%s0 + $0x60] sm:$0xff]
    %v53 = vld [vmem:[%s0 + $0x68] sm:$0xff]
    %v54 = vld [vmem:[%s0 + $0x70] sm:$0xff]
    %v55 = vld [vmem:[%s0 + $0x78] sm:$0xff]
    %v56 = vld [vmem:[%s0 + $0x80] sm:$0xff]
    %v57 = vld [vmem:[%s0 + $0x88] sm:$0xff]
    %v58 = vld [vmem:[%s0 + $0x90] sm:$0xff]
    %v59 = vld [vmem:[%s0 + $0x98] sm:$0xff]
    %v60 = vld [vmem:[%s0 + $0xa0] sm:$0xff]
    %v61 = vld [vmem:[%s0 + $0xa8] sm:$0xff]
    %v62 = vld [vmem:[%s0 + $0xb0] sm:$0xff]
    %v63 = vld [vmem:[%s0 + $0xb8] sm:$0xff]
    %v64 = vld [vmem:[%s0 + $0xc0] sm:$0xff]
    %v65 = vld [vmem:[%s0 + $0xc8] sm:$0xff]
    %v66 = vld [vmem:[%s0 + $0xd0] sm:$0xff]
    %v67 = vld [vmem:[%s0 + $0xd8] sm:$0xff]
    %v68 = vld [vmem:[%s0 + $0xe0] sm:$0xff]
    %v69 = vld [vmem:[%s0 + $0xe8] sm:$0xff]
    %v70 = vld [vmem:[%s0 + $0xf0] sm:$0xff]
    %v71 = vld [vmem:[%s0 + $0xf8] sm:$0xff]
    %v72 = vld [vmem:[%s0 + $0x100] sm:$0xff]
    %v73 = vld [vmem:[%s0 + $0x108] sm:$0xff]
    %v74 = vld [vmem:[%s0 + $0x110] sm:$0xff]
    %v75 = vld [vmem:[%s0 + $0x118] sm:$0xff]
    %v76 = vld [vmem:[%s0 + $0x120] sm:$0xff]
    %v77 = vld [vmem:[%s0 + $0x128] sm:$0xff]
    %v78 = vld [vmem:[%s0 + $0x130] sm:$0xff]
    %v79 = vld [vmem:[%s0 + $0x138] sm:$0xff]
    %v80 = vld [vmem:[%s0 + $0x140] sm:$0xff]
    %v81 = vld [vmem:[%s0 + $0x148] sm:$0xff]
    %v82 = vld [vmem:[%s0 + $0x150] sm:$0xff]
    %v83 = vld [vmem:[%s0 + $0x158] sm:$0xff]
    %v84 = vld [vmem:[%s0 + $0x160] sm:$0xff]
    %v85 = vld [vmem:[%s0 + $0x168] sm:$0xff]
    %v86 = vld [vmem:[%s0 + $0x170] sm:$0xff]
    %v87 = vld [vmem:[%s0 + $0x178] sm:$0xff]
    %v88 = vld [vmem:[%s0 + $0x180] sm:$0xff]
    %v89 = vld [vmem:[%s0 + $0x188] sm:$0xff]
    %v90 = vld [vmem:[%s0 + $0x190] sm:$0xff]
    %v91 = vld [vmem:[%s0 + $0x198] sm:$0xff]
    %v92 = vld [vmem:[%s0 + $0x1a0] sm:$0xff]
    %v93 = vld [vmem:[%s0 + $0x1a8] sm:$0xff]
    %v94 = vld [vmem:[%s0 + $0x1b0] sm:$0xff]
    %v95 = vld [vmem:[%s0 + $0x1b8] sm:$0xff]
    %v96 = vld [vmem:[%s0 + $0x1c0] sm:$0xff]
    %v97 = vld [vmem:[%s0 + $0x1c8] sm:$0xff]
    %v98 = vld [vmem:[%s0 + $0x1d0] sm:$0xff]
    %v99 = vld [vmem:[%s0 + $0x1d8] sm:$0xff]
    %v100 = vld [vmem:[%s0 + $0x1e0] sm:$0xff]
    %v101 = vld [vmem:[%s0 + $0x1e8] sm:$0xff]
    %v102 = vld [vmem:[%s0 + $0x1f0] sm:$0xff]
    %v103 = vld [vmem:[%s0 + $0x1f8] sm:$0xff]
    %v104 = vld [vmem:[%s0 + $0x200] sm:$0xff]
    %v105 = vld [vmem:[%s0 + $0x208] sm:$0xff]
    %v106 = vld [vmem:[%s0 + $0x210] sm:$0xff]
    %v107 = vld [vmem:[%s0 + $0x218] sm:$0xff]
    %v108 = vld [vmem:[%s0 + $0x220] sm:$0xff]
    %v109 = vld [vmem:[%s0 + $0x228] sm:$0xff]
    %v110 = vld [vmem:[%s0 + $0x230] sm:$0xff]
    %v111 = vld [vmem:[%s0 + $0x238] sm:$0xff]
    %v115 = vunpack.c.l.b16 %v37
    %v116 = vunpack.c.h.b16 %v37
    %v117 = vunpack.c.l.b16 %v38
    %v118 = vunpack.c.h.b16 %v38
    %v119 = vunpack.c.l.b16 %v39
    %v120 = vunpack.c.h.b16 %v39
    %v121 = vpack.c.b16 %v117, %v115
    %v122 = vpack.c.b16 %v118, %v116
    %v123 = vpack.c.b16 %v119, %v119
    %v124 = vpack.c.b16 %v120, %v120
    %v199 = vunpack.c.l.b16 %v40
    %v200 = vunpack.c.h.b16 %v40
    %v201 = vunpack.c.l.b16 %v41
    %v202 = vunpack.c.h.b16 %v41
    %v203 = vunpack.c.l.b16 %v42
    %v204 = vunpack.c.h.b16 %v42
    %v205 = vunpack.c.l.b16 %v43
    %v206 = vunpack.c.h.b16 %v43
    %v207 = vunpack.c.l.b16 %v44
    %v208 = vunpack.c.h.b16 %v44
    %v209 = vunpack.c.l.b16 %v45
    %v210 = vunpack.c.h.b16 %v45
    %v211 = vunpack.c.l.b16 %v46
    %v212 = vunpack.c.h.b16 %v46
    %v213 = vunpack.c.l.b16 %v47
    %v214 = vunpack.c.h.b16 %v47
    %v215 = vunpack.c.l.b16 %v48
    %v216 = vunpack.c.h.b16 %v48
    %v217 = vunpack.c.l.b16 %v49
    %v218 = vunpack.c.h.b16 %v49
    %v219 = vunpack.c.l.b16 %v50
    %v220 = vunpack.c.h.b16 %v50
    %v221 = vunpack.c.l.b16 %v51
    %v222 = vunpack.c.h.b16 %v51
    %v223 = vunpack.c.l.b16 %v52
    %v224 = vunpack.c.h.b16 %v52
    %v225 = vunpack.c.l.b16 %v53
    %v226 = vunpack.c.h.b16 %v53
    %v227 = vunpack.c.l.b16 %v54
    %v228 = vunpack.c.h.b16 %v54
    %v229 = vunpack.c.l.b16 %v55
    %v230 = vunpack.c.h.b16 %v55
    %v231 = vunpack.c.l.b16 %v56
    %v232 = vunpack.c.h.b16 %v56
    %v233 = vunpack.c.l.b16 %v57
    %v234 = vunpack.c.h.b16 %v57
    %v235 = vunpack.c.l.b16 %v58
    %v236 = vunpack.c.h.b16 %v58
    %v237 = vunpack.c.l.b16 %v59
    %v238 = vunpack.c.h.b16 %v59
    %v239 = vunpack.c.l.b16 %v60
    %v240 = vunpack.c.h.b16 %v60
    %v241 = vunpack.c.l.b16 %v61
    %v242 = vunpack.c.h.b16 %v61
    %v243 = vunpack.c.l.b16 %v62
    %v244 = vunpack.c.h.b16 %v62
    %v245 = vunpack.c.l.b16 %v63
    %v246 = vunpack.c.h.b16 %v63
    %v247 = vunpack.c.l.b16 %v64
    %v248 = vunpack.c.h.b16 %v64
    %v249 = vunpack.c.l.b16 %v65
    %v250 = vunpack.c.h.b16 %v65
    %v251 = vunpack.c.l.b16 %v66
    %v252 = vunpack.c.h.b16 %v66
    %v253 = vunpack.c.l.b16 %v67
    %v254 = vunpack.c.h.b16 %v67
    %v255 = vunpack.c.l.b16 %v68
    %v256 = vunpack.c.h.b16 %v68
    %v257 = vunpack.c.l.b16 %v69
    %v258 = vunpack.c.h.b16 %v69
    %v259 = vunpack.c.l.b16 %v70
    %v260 = vunpack.c.h.b16 %v70
    %v261 = vunpack.c.l.b16 %v71
    %v262 = vunpack.c.h.b16 %v71
    %v263 = vunpack.c.l.b16 %v72
    %v264 = vunpack.c.h.b16 %v72
    %v265 = vunpack.c.l.b16 %v73
    %v266 = vunpack.c.h.b16 %v73
    %v267 = vunpack.c.l.b16 %v74
    %v268 = vunpack.c.h.b16 %v74
    %v269 = vunpack.c.l.b16 %v75
    %v270 = vunpack.c.h.b16 %v75
    %v271 = vunpack.c.l.b16 %v76
    %v272 = vunpack.c.h.b16 %v76
    %v273 = vunpack.c.l.b16 %v77
    %v274 = vunpack.c.h.b16 %v77
    %v275 = vunpack.c.l.b16 %v78
    %v276 = vunpack.c.h.b16 %v78
    %v277 = vunpack.c.l.b16 %v79
    %v278 = vunpack.c.h.b16 %v79
    %v279 = vunpack.c.l.b16 %v80
    %v280 = vunpack.c.h.b16 %v80
    %v281 = vunpack.c.l.b16 %v81
    %v282 = vunpack.c.h.b16 %v81
    %v283 = vunpack.c.l.b16 %v82
    %v284 = vunpack.c.h.b16 %v82
    %v285 = vunpack.c.l.b16 %v83
    %v286 = vunpack.c.h.b16 %v83
    %v287 = vunpack.c.l.b16 %v84
    %v288 = vunpack.c.h.b16 %v84
    %v289 = vunpack.c.l.b16 %v85
    %v290 = vunpack.c.h.b16 %v85
    %v291 = vunpack.c.l.b16 %v86
    %v292 = vunpack.c.h.b16 %v86
    %v293 = vunpack.c.l.b16 %v87
    %v294 = vunpack.c.h.b16 %v87
    %v295 = vunpack.c.l.b16 %v88
    %v296 = vunpack.c.h.b16 %v88
    %v297 = vunpack.c.l.b16 %v89
    %v298 = vunpack.c.h.b16 %v89
    %v299 = vunpack.c.l.b16 %v90
    %v300 = vunpack.c.h.b16 %v90
    %v301 = vunpack.c.l.b16 %v91
    %v302 = vunpack.c.h.b16 %v91
    %v303 = vunpack.c.l.b16 %v92
    %v304 = vunpack.c.h.b16 %v92
    %v305 = vunpack.c.l.b16 %v93
    %v306 = vunpack.c.h.b16 %v93
    %v307 = vunpack.c.l.b16 %v94
    %v308 = vunpack.c.h.b16 %v94
    %v309 = vunpack.c.l.b16 %v95
    %v310 = vunpack.c.h.b16 %v95
    %v311 = vunpack.c.l.b16 %v96
    %v312 = vunpack.c.h.b16 %v96
    %v313 = vunpack.c.l.b16 %v97
    %v314 = vunpack.c.h.b16 %v97
    %v315 = vunpack.c.l.b16 %v98
    %v316 = vunpack.c.h.b16 %v98
    %v317 = vunpack.c.l.b16 %v99
    %v318 = vunpack.c.h.b16 %v99
    %v319 = vunpack.c.l.b16 %v100
    %v320 = vunpack.c.h.b16 %v100
    %v321 = vunpack.c.l.b16 %v101
    %v322 = vunpack.c.h.b16 %v101
    %v323 = vunpack.c.l.b16 %v102
    %v324 = vunpack.c.h.b16 %v102
    %v325 = vunpack.c.l.b16 %v103
    %v326 = vunpack.c.h.b16 %v103
    %v327 = vunpack.c.l.b16 %v104
    %v328 = vunpack.c.h.b16 %v104
    %v329 = vunpack.c.l.b16 %v105
    %v330 = vunpack.c.h.b16 %v105
    %v331 = vunpack.c.l.b16 %v106
    %v332 = vunpack.c.h.b16 %v106
    %v333 = vunpack.c.l.b16 %v107
    %v334 = vunpack.c.h.b16 %v107
    %v335 = vunpack.c.l.b16 %v108
    %v336 = vunpack.c.h.b16 %v108
    %v337 = vunpack.c.l.b16 %v109
    %v338 = vunpack.c.h.b16 %v109
    %v339 = vunpack.c.l.b16 %v110
    %v340 = vunpack.c.h.b16 %v110
    %v341 = vunpack.c.l.b16 %v111
    %v342 = vunpack.c.h.b16 %v111
    %v343 = vpack.c.b16 %v205, %v199
    %v344 = vpack.c.b16 %v206, %v200
    %v345 = vpack.c.b16 %v207, %v201
    %v346 = vpack.c.b16 %v208, %v202
    %v347 = vpack.c.b16 %v209, %v203
    %v348 = vpack.c.b16 %v210, %v204
    %v349 = vpack.c.b16 %v217, %v211
    %v350 = vpack.c.b16 %v218, %v212
    %v351 = vpack.c.b16 %v219, %v213
    %v352 = vpack.c.b16 %v220, %v214
    %v353 = vpack.c.b16 %v221, %v215
    %v354 = vpack.c.b16 %v222, %v216
    %v355 = vpack.c.b16 %v229, %v223
    %v356 = vpack.c.b16 %v230, %v224
    %v357 = vpack.c.b16 %v231, %v225
    %v358 = vpack.c.b16 %v232, %v226
    %v359 = vpack.c.b16 %v233, %v227
    %v360 = vpack.c.b16 %v234, %v228
    %v361 = vpack.c.b16 %v241, %v235
    %v362 = vpack.c.b16 %v242, %v236
    %v363 = vpack.c.b16 %v243, %v237
    %v364 = vpack.c.b16 %v244, %v238
    %v365 = vpack.c.b16 %v245, %v239
    %v366 = vpack.c.b16 %v246, %v240
    %v367 = vpack.c.b16 %v253, %v247
    %v368 = vpack.c.b16 %v254, %v248
    %v369 = vpack.c.b16 %v255, %v249
    %v370 = vpack.c.b16 %v256, %v250
    %v371 = vpack.c.b16 %v257, %v251
    %v372 = vpack.c.b16 %v258, %v252
    %v373 = vpack.c.b16 %v265, %v259
    %v374 = vpack.c.b16 %v266, %v260
    %v375 = vpack.c.b16 %v267, %v261
    %v376 = vpack.c.b16 %v268, %v262
    %v377 = vpack.c.b16 %v269, %v263
    %v378 = vpack.c.b16 %v270, %v264
    %v379 = vpack.c.b16 %v277, %v271
    %v380 = vpack.c.b16 %v278, %v272
    %v381 = vpack.c.b16 %v279, %v273
    %v382 = vpack.c.b16 %v280, %v274
    %v383 = vpack.c.b16 %v281, %v275
    %v384 = vpack.c.b16 %v282, %v276
    %v385 = vpack.c.b16 %v289, %v283
    %v386 = vpack.c.b16 %v290, %v284
    %v387 = vpack.c.b16 %v291, %v285
    %v388 = vpack.c.b16 %v292, %v286
    %v389 = vpack.c.b16 %v293, %v287
    %v390 = vpack.c.b16 %v294, %v288
    %v391 = vpack.c.b16 %v301, %v295
    %v392 = vpack.c.b16 %v302, %v296
    %v393 = vpack.c.b16 %v303, %v297
    %v394 = vpack.c.b16 %v304, %v298
    %v395 = vpack.c.b16 %v305, %v299
    %v396 = vpack.c.b16 %v306, %v300
    %v397 = vpack.c.b16 %v313, %v307
    %v398 = vpack.c.b16 %v314, %v308
    %v399 = vpack.c.b16 %v315, %v309
    %v400 = vpack.c.b16 %v316, %v310
    %v401 = vpack.c.b16 %v317, %v311
    %v402 = vpack.c.b16 %v318, %v312
    %v403 = vpack.c.b16 %v325, %v319
    %v404 = vpack.c.b16 %v326, %v320
    %v405 = vpack.c.b16 %v327, %v321
    %v406 = vpack.c.b16 %v328, %v322
    %v407 = vpack.c.b16 %v329, %v323
    %v408 = vpack.c.b16 %v330, %v324
    %v409 = vpack.c.b16 %v337, %v331
    %v410 = vpack.c.b16 %v338, %v332
    %v411 = vpack.c.b16 %v339, %v333
    %v412 = vpack.c.b16 %v340, %v334
    %v413 = vpack.c.b16 %v341, %v335
    %v414 = vpack.c.b16 %v342, %v336
    %vm487 = vcmask 523264
    %v489 = vsel %vm487, %v122, 0
    %v492 = vsel %vm487, %v124, 0
    %494 = vmatpush.bf16.msra.mxu0 %v385
    %495 = vmatpush.bf16.msra.mxu0 %v379
    %496 = vmatpush.bf16.msra.mxu0 %v373
    %497 = vmatpush.bf16.msra.mxu0 %v367
    %498 = vmatpush.bf16.msra.mxu0 %v361
    %499 = vmatpush.bf16.msra.mxu0 %v355
    %500 = vmatpush.bf16.msra.mxu0 %v349
    %501 = vmatpush.bf16.msra.mxu0 %v343
    %502 = vmatmul.bf16.gmra.mxu0 %v121
    %v503 = vpop.f32.mrf.mxu0
    %v504 = vadd.f32 0.0, %v503
    %v505 = vpop.f32.mrf.mxu0
    %v506 = vadd.f32 0.0, %v505
    %507 = vmatmul.bf16.gmra.mxu0 %v123
    %v508 = vpop.f32.mrf.mxu0
    %v509 = vadd.f32 0.0, %v508
    %v510 = vpop.f32.mrf.mxu0
    %511 = vdwg.mxu0
    %512 = vmatpush.bf16.msra.mxu0 0
    %513 = vmatpush.bf16.msra.mxu0 0
    %514 = vmatpush.bf16.msra.mxu0 0
    %515 = vmatpush.bf16.msra.mxu0 0
    %516 = vmatpush.bf16.msra.mxu0 %v409
    %517 = vmatpush.bf16.msra.mxu0 %v403
    %518 = vmatpush.bf16.msra.mxu0 %v397
    %519 = vmatpush.bf16.msra.mxu0 %v391
    %520 = vmatmul.bf16.gmra.mxu0 %v489
    %v521 = vpop.f32.mrf.mxu0
    %v522 = vadd.f32 %v504, %v521
    %v523 = vpop.f32.mrf.mxu0
    %v524 = vadd.f32 %v506, %v523
    %525 = vmatmul.bf16.gmra.mxu0 %v492
    %v526 = vpop.f32.mrf.mxu0
    %v527 = vadd.f32 %v509, %v526
    %v528 = vpop.f32.mrf.mxu0
    %529 = vdwg.mxu0
    %530 = vmatpush.bf16.msra.mxu0 %v386
    %531 = vmatpush.bf16.msra.mxu0 %v380
    %532 = vmatpush.bf16.msra.mxu0 %v374
    %533 = vmatpush.bf16.msra.mxu0 %v368
    %534 = vmatpush.bf16.msra.mxu0 %v362
    %535 = vmatpush.bf16.msra.mxu0 %v356
    %536 = vmatpush.bf16.msra.mxu0 %v350
    %537 = vmatpush.bf16.msra.mxu0 %v344
    %538 = vmatmul.bf16.gmra.mxu0 %v121
    %v539 = vpop.f32.mrf.mxu0
    %v540 = vadd.f32 0.0, %v539
    %v541 = vpop.f32.mrf.mxu0
    %v542 = vadd.f32 0.0, %v541
    %543 = vmatmul.bf16.gmra.mxu0 %v123
    %v544 = vpop.f32.mrf.mxu0
    %v545 = vadd.f32 0.0, %v544
    %v546 = vpop.f32.mrf.mxu0
    %547 = vdwg.mxu0
    %548 = vmatpush.bf16.msra.mxu0 0
    %549 = vmatpush.bf16.msra.mxu0 0
    %550 = vmatpush.bf16.msra.mxu0 0
    %551 = vmatpush.bf16.msra.mxu0 0
    %552 = vmatpush.bf16.msra.mxu0 %v410
    %553 = vmatpush.bf16.msra.mxu0 %v404
    %554 = vmatpush.bf16.msra.mxu0 %v398
    %555 = vmatpush.bf16.msra.mxu0 %v392
    %556 = vmatmul.bf16.gmra.mxu0 %v489
    %v557 = vpop.f32.mrf.mxu0
    %v558 = vadd.f32 %v540, %v557
    %v559 = vpop.f32.mrf.mxu0
    %v560 = vadd.f32 %v542, %v559
    %561 = vmatmul.bf16.gmra.mxu0 %v492
    %v562 = vpop.f32.mrf.mxu0
    %v563 = vadd.f32 %v545, %v562
    %v564 = vpop.f32.mrf.mxu0
    %565 = vdwg.mxu0
    %566 = vmatpush.bf16.msra.mxu0 %v387
    %567 = vmatpush.bf16.msra.mxu0 %v381
    %568 = vmatpush.bf16.msra.mxu0 %v375
    %569 = vmatpush.bf16.msra.mxu0 %v369
    %570 = vmatpush.bf16.msra.mxu0 %v363
    %571 = vmatpush.bf16.msra.mxu0 %v357
    %572 = vmatpush.bf16.msra.mxu0 %v351
    %573 = vmatpush.bf16.msra.mxu0 %v345
    %574 = vmatmul.bf16.gmra.mxu0 %v121
    %v575 = vpop.f32.mrf.mxu0
    %v576 = vadd.f32 0.0, %v575
    %v577 = vpop.f32.mrf.mxu0
    %v578 = vadd.f32 0.0, %v577
    %579 = vmatmul.bf16.gmra.mxu0 %v123
    %v580 = vpop.f32.mrf.mxu0
    %v581 = vadd.f32 0.0, %v580
    %v582 = vpop.f32.mrf.mxu0
    %583 = vdwg.mxu0
    %584 = vmatpush.bf16.msra.mxu0 0
    %585 = vmatpush.bf16.msra.mxu0 0
    %586 = vmatpush.bf16.msra.mxu0 0
    %587 = vmatpush.bf16.msra.mxu0 0
    %588 = vmatpush.bf16.msra.mxu0 %v411
    %589 = vmatpush.bf16.msra.mxu0 %v405
    %590 = vmatpush.bf16.msra.mxu0 %v399
    %591 = vmatpush.bf16.msra.mxu0 %v393
    %592 = vmatmul.bf16.gmra.mxu0 %v489
    %v593 = vpop.f32.mrf.mxu0
    %v594 = vadd.f32 %v576, %v593
    %v595 = vpop.f32.mrf.mxu0
    %v596 = vadd.f32 %v578, %v595
    %597 = vmatmul.bf16.gmra.mxu0 %v492
    %v598 = vpop.f32.mrf.mxu0
    %v599 = vadd.f32 %v581, %v598
    %v600 = vpop.f32.mrf.mxu0
    %601 = vdwg.mxu0
    %602 = vmatpush.bf16.msra.mxu0 %v388
    %603 = vmatpush.bf16.msra.mxu0 %v382
    %604 = vmatpush.bf16.msra.mxu0 %v376
    %605 = vmatpush.bf16.msra.mxu0 %v370
    %606 = vmatpush.bf16.msra.mxu0 %v364
    %607 = vmatpush.bf16.msra.mxu0 %v358
    %608 = vmatpush.bf16.msra.mxu0 %v352
    %609 = vmatpush.bf16.msra.mxu0 %v346
    %610 = vmatmul.bf16.gmra.mxu0 %v121
    %v611 = vpop.f32.mrf.mxu0
    %v612 = vadd.f32 0.0, %v611
    %v613 = vpop.f32.mrf.mxu0
    %v614 = vadd.f32 0.0, %v613
    %615 = vmatmul.bf16.gmra.mxu0 %v123
    %v616 = vpop.f32.mrf.mxu0
    %v617 = vadd.f32 0.0, %v616
    %v618 = vpop.f32.mrf.mxu0
    %619 = vdwg.mxu0
    %620 = vmatpush.bf16.msra.mxu0 0
    %621 = vmatpush.bf16.msra.mxu0 0
    %622 = vmatpush.bf16.msra.mxu0 0
    %623 = vmatpush.bf16.msra.mxu0 0
    %624 = vmatpush.bf16.msra.mxu0 %v412
    %625 = vmatpush.bf16.msra.mxu0 %v406
    %626 = vmatpush.bf16.msra.mxu0 %v400
    %627 = vmatpush.bf16.msra.mxu0 %v394
    %628 = vmatmul.bf16.gmra.mxu0 %v489
    %v629 = vpop.f32.mrf.mxu0
    %v630 = vadd.f32 %v612, %v629
    %v631 = vpop.f32.mrf.mxu0
    %v632 = vadd.f32 %v614, %v631
    %633 = vmatmul.bf16.gmra.mxu0 %v492
    %v634 = vpop.f32.mrf.mxu0
    %v635 = vadd.f32 %v617, %v634
    %v636 = vpop.f32.mrf.mxu0
    %637 = vdwg.mxu0
    %638 = vmatpush.bf16.msra.mxu0 %v389
    %639 = vmatpush.bf16.msra.mxu0 %v383
    %640 = vmatpush.bf16.msra.mxu0 %v377
    %641 = vmatpush.bf16.msra.mxu0 %v371
    %642 = vmatpush.bf16.msra.mxu0 %v365
    %643 = vmatpush.bf16.msra.mxu0 %v359
    %644 = vmatpush.bf16.msra.mxu0 %v353
    %645 = vmatpush.bf16.msra.mxu0 %v347
    %646 = vmatmul.bf16.gmra.mxu0 %v121
    %v647 = vpop.f32.mrf.mxu0
    %v648 = vadd.f32 0.0, %v647
    %v649 = vpop.f32.mrf.mxu0
    %v650 = vadd.f32 0.0, %v649
    %651 = vmatmul.bf16.gmra.mxu0 %v123
    %v652 = vpop.f32.mrf.mxu0
    %v653 = vadd.f32 0.0, %v652
    %v654 = vpop.f32.mrf.mxu0
    %655 = vdwg.mxu0
    %656 = vmatpush.bf16.msra.mxu0 0
    %657 = vmatpush.bf16.msra.mxu0 0
    %658 = vmatpush.bf16.msra.mxu0 0
    %659 = vmatpush.bf16.msra.mxu0 0
    %660 = vmatpush.bf16.msra.mxu0 %v413
    %661 = vmatpush.bf16.msra.mxu0 %v407
    %662 = vmatpush.bf16.msra.mxu0 %v401
    %663 = vmatpush.bf16.msra.mxu0 %v395
    %664 = vmatmul.bf16.gmra.mxu0 %v489
    %v665 = vpop.f32.mrf.mxu0
    %v666 = vadd.f32 %v648, %v665
    %v667 = vpop.f32.mrf.mxu0
    %v668 = vadd.f32 %v650, %v667
    %669 = vmatmul.bf16.gmra.mxu0 %v492
    %v670 = vpop.f32.mrf.mxu0
    %v671 = vadd.f32 %v653, %v670
    %v672 = vpop.f32.mrf.mxu0
    %673 = vdwg.mxu0
    %674 = vmatpush.bf16.msra.mxu0 %v390
    %675 = vmatpush.bf16.msra.mxu0 %v384
    %676 = vmatpush.bf16.msra.mxu0 %v378
    %677 = vmatpush.bf16.msra.mxu0 %v372
    %678 = vmatpush.bf16.msra.mxu0 %v366
    %679 = vmatpush.bf16.msra.mxu0 %v360
    %680 = vmatpush.bf16.msra.mxu0 %v354
    %681 = vmatpush.bf16.msra.mxu0 %v348
    %682 = vmatmul.bf16.gmra.mxu0 %v121
    %v683 = vpop.f32.mrf.mxu0
    %v684 = vadd.f32 0.0, %v683
    %v685 = vpop.f32.mrf.mxu0
    %v686 = vadd.f32 0.0, %v685
    %687 = vmatmul.bf16.gmra.mxu0 %v123
    %v688 = vpop.f32.mrf.mxu0
    %v689 = vadd.f32 0.0, %v688
    %v690 = vpop.f32.mrf.mxu0
    %691 = vdwg.mxu0
    %692 = vmatpush.bf16.msra.mxu0 0
    %693 = vmatpush.bf16.msra.mxu0 0
    %694 = vmatpush.bf16.msra.mxu0 0
    %695 = vmatpush.bf16.msra.mxu0 0
    %696 = vmatpush.bf16.msra.mxu0 %v414
    %697 = vmatpush.bf16.msra.mxu0 %v408
    %698 = vmatpush.bf16.msra.mxu0 %v402
    %699 = vmatpush.bf16.msra.mxu0 %v396
    %700 = vmatmul.bf16.gmra.mxu0 %v489
    %v701 = vpop.f32.mrf.mxu0
    %v702 = vadd.f32 %v684, %v701
    %v703 = vpop.f32.mrf.mxu0
    %v704 = vadd.f32 %v686, %v703
    %705 = vmatmul.bf16.gmra.mxu0 %v492
    %v706 = vpop.f32.mrf.mxu0
    %v707 = vadd.f32 %v689, %v706
    %v708 = vpop.f32.mrf.mxu0
    %709 = vdwg.mxu0
    %v710 = vmax.f32 %v522, %v558
    %v711 = vmax.f32 %v524, %v560
    %v712 = vmax.f32 %v527, %v563
    %v713 = vmax.f32 %v710, %v594
    %v714 = vmax.f32 %v711, %v596
    %v715 = vmax.f32 %v712, %v599
    %v716 = vmax.f32 %v713, %v630
    %v717 = vmax.f32 %v714, %v632
    %v718 = vmax.f32 %v715, %v635
    %v719 = vmax.f32 %v716, %v666
    %v720 = vmax.f32 %v717, %v668
    %v721 = vmax.f32 %v718, %v671
    %v722 = vmax.f32 %v719, %v702
    %v723 = vmax.f32 %v720, %v704
    %v724 = vmax.f32 %v721, %v707
    %v725 = vld [vmem:[%s2] sm:$0xff]
    %v726 = vld [vmem:[%s2 + $0x8] sm:$0xff]
    %v727 = vld [vmem:[%s2 + $0x10] sm:$0xff]
    %729 = vset.pattern.permute.xlu0 0
    %730 = vperm.xlu0 %729, %v725
    %v731 = vpop.permute.xlu0 %730
    %734 = vset.pattern.permute.xlu0 0
    %735 = vperm.xlu0 %734, %v726
    %v736 = vpop.permute.xlu0 %735
    %739 = vset.pattern.permute.xlu0 0
    %740 = vperm.xlu0 %739, %v727
    %v741 = vpop.permute.xlu0 %740
    %v743 = vadd.f32 %v722, %v731
    %v744 = vadd.f32 %v723, %v736
    %v745 = vadd.f32 %v724, %v741
    %v746 = vmax.f32 %v743, 0.0
    %v747 = vmax.f32 %v744, 0.0
    %v748 = vmax.f32 %v745, 0.0
    %v749 = vld [vmem:[%s3] sm:$0xff]
    %v750 = vld [vmem:[%s3 + $0x8] sm:$0xff]
    %v751 = vld [vmem:[%s3 + $0x10] sm:$0xff]
    %v752 = vld [vmem:[%s3 + $0x18] sm:$0xff]
    %v753 = vld [vmem:[%s3 + $0x20] sm:$0xff]
    %v754 = vld [vmem:[%s3 + $0x28] sm:$0xff]
    %v755 = vld [vmem:[%s3 + $0x30] sm:$0xff]
    %v756 = vld [vmem:[%s3 + $0x38] sm:$0xff]
    %v757 = vld [vmem:[%s3 + $0x40] sm:$0xff]
    %v758 = vld [vmem:[%s3 + $0x48] sm:$0xff]
    %v759 = vld [vmem:[%s3 + $0x50] sm:$0xff]
    %v760 = vld [vmem:[%s3 + $0x58] sm:$0xff]
    %v761 = vld [vmem:[%s3 + $0x60] sm:$0xff]
    %v762 = vld [vmem:[%s3 + $0x68] sm:$0xff]
    %v763 = vld [vmem:[%s3 + $0x70] sm:$0xff]
    %v764 = vld [vmem:[%s3 + $0x78] sm:$0xff]
    %v765 = vld [vmem:[%s4] sm:$0x3]
    %vm768 = vcmask 1043456
    %v769 = vrot.slane %v747, 4
    %v770 = vrot.slane %v748, 4
    %v771 = vsel %vm768, %v769, %v770
    %772 = vrot.lane.b32.xlu0 %v771, 64
    %v773 = vpop.permute.xlu0 %772
    %774 = vrot.lane.b32.xlu0 %v770, 64
    %v775 = vpop.permute.xlu0 %774
    %v778 = vsel %vm487, %v746, %v773
    %v779 = vsel %vm487, %v747, %v775
    %v780 = vpack.c.bf16 %v779, %v778
    %v782 = vperm.slane %v765, 0
    %v783 = vperm.slane %v765, 1
    %v802 = vunpack.c.l.b16 %v749
    %v803 = vunpack.c.h.b16 %v749
    %v804 = vunpack.c.l.b16 %v750
    %v805 = vunpack.c.h.b16 %v750
    %v806 = vunpack.c.l.b16 %v751
    %v807 = vunpack.c.h.b16 %v751
    %v808 = vunpack.c.l.b16 %v752
    %v809 = vunpack.c.h.b16 %v752
    %v810 = vunpack.c.l.b16 %v753
    %v811 = vunpack.c.h.b16 %v753
    %v812 = vunpack.c.l.b16 %v754
    %v813 = vunpack.c.h.b16 %v754
    %v814 = vunpack.c.l.b16 %v755
    %v815 = vunpack.c.h.b16 %v755
    %v816 = vunpack.c.l.b16 %v756
    %v817 = vunpack.c.h.b16 %v756
    %v818 = vunpack.c.l.b16 %v757
    %v819 = vunpack.c.h.b16 %v757
    %v820 = vunpack.c.l.b16 %v758
    %v821 = vunpack.c.h.b16 %v758
    %v822 = vunpack.c.l.b16 %v759
    %v823 = vunpack.c.h.b16 %v759
    %v824 = vunpack.c.l.b16 %v760
    %v825 = vunpack.c.h.b16 %v760
    %v826 = vunpack.c.l.b16 %v761
    %v827 = vunpack.c.h.b16 %v761
    %v828 = vunpack.c.l.b16 %v762
    %v829 = vunpack.c.h.b16 %v762
    %v830 = vunpack.c.l.b16 %v763
    %v831 = vunpack.c.h.b16 %v763
    %v832 = vunpack.c.l.b16 %v764
    %v833 = vunpack.c.h.b16 %v764
    %v834 = vpack.c.b16 %v804, %v802
    %v835 = vpack.c.b16 %v805, %v803
    %v836 = vpack.c.b16 %v808, %v806
    %v837 = vpack.c.b16 %v809, %v807
    %v838 = vpack.c.b16 %v812, %v810
    %v839 = vpack.c.b16 %v813, %v811
    %v840 = vpack.c.b16 %v816, %v814
    %v841 = vpack.c.b16 %v817, %v815
    %v842 = vpack.c.b16 %v820, %v818
    %v843 = vpack.c.b16 %v821, %v819
    %v844 = vpack.c.b16 %v824, %v822
    %v845 = vpack.c.b16 %v825, %v823
    %v846 = vpack.c.b16 %v828, %v826
    %v847 = vpack.c.b16 %v829, %v827
    %v848 = vpack.c.b16 %v832, %v830
    %v849 = vpack.c.b16 %v833, %v831
    %866 = vmatpush.bf16.msra.mxu0 %v848
    %867 = vmatpush.bf16.msra.mxu0 %v846
    %868 = vmatpush.bf16.msra.mxu0 %v844
    %869 = vmatpush.bf16.msra.mxu0 %v842
    %870 = vmatpush.bf16.msra.mxu0 %v840
    %871 = vmatpush.bf16.msra.mxu0 %v838
    %872 = vmatpush.bf16.msra.mxu0 %v836
    %873 = vmatpush.bf16.msra.mxu0 %v834
    %874 = vmatmul.bf16.gmra.mxu0 %v780
    %v875 = vpop.f32.mrf.mxu0
    %v876 = vadd.f32 %v782, %v875
    %v877 = vpop.f32.mrf.mxu0
    %v878 = vadd.f32 %v782, %v877
    %879 = vdwg.mxu0
    %880 = vmatpush.bf16.msra.mxu0 %v849
    %881 = vmatpush.bf16.msra.mxu0 %v847
    %882 = vmatpush.bf16.msra.mxu0 %v845
    %883 = vmatpush.bf16.msra.mxu0 %v843
    %884 = vmatpush.bf16.msra.mxu0 %v841
    %885 = vmatpush.bf16.msra.mxu0 %v839
    %886 = vmatpush.bf16.msra.mxu0 %v837
    %887 = vmatpush.bf16.msra.mxu0 %v835
    %888 = vmatmul.bf16.gmra.mxu0 %v780
    %v889 = vpop.f32.mrf.mxu0
    %v890 = vadd.f32 %v783, %v889
    %v891 = vpop.f32.mrf.mxu0
    %v892 = vadd.f32 %v783, %v891
    %893 = vdwg.mxu0
    %895 = vrot.lane.b32.xlu0 %v746, 64
    %v896 = vpop.permute.xlu0 %895
    %897 = vrot.lane.b32.xlu0 %v747, 64
    %v898 = vpop.permute.xlu0 %897
    %v903 = vsel %vm487, %v896, %v771
    %v904 = vsel %vm487, %v898, %v770
    %v905 = vpack.c.bf16 %v904, %v903
    %906 = vmatpush.bf16.msra.mxu0 %v848
    %907 = vmatpush.bf16.msra.mxu0 %v846
    %908 = vmatpush.bf16.msra.mxu0 %v844
    %909 = vmatpush.bf16.msra.mxu0 %v842
    %910 = vmatpush.bf16.msra.mxu0 %v840
    %911 = vmatpush.bf16.msra.mxu0 %v838
    %912 = vmatpush.bf16.msra.mxu0 %v836
    %913 = vmatpush.bf16.msra.mxu0 %v834
    %914 = vmatmul.bf16.gmra.mxu0 %v905
    %v915 = vpop.f32.mrf.mxu0
    %v916 = vadd.f32 %v782, %v915
    %v917 = vpop.f32.mrf.mxu0
    %v918 = vadd.f32 %v782, %v917
    %919 = vdwg.mxu0
    %920 = vmatpush.bf16.msra.mxu0 %v849
    %921 = vmatpush.bf16.msra.mxu0 %v847
    %922 = vmatpush.bf16.msra.mxu0 %v845
    %923 = vmatpush.bf16.msra.mxu0 %v843
    %924 = vmatpush.bf16.msra.mxu0 %v841
    %925 = vmatpush.bf16.msra.mxu0 %v839
    %926 = vmatpush.bf16.msra.mxu0 %v837
    %927 = vmatpush.bf16.msra.mxu0 %v835
    %928 = vmatmul.bf16.gmra.mxu0 %v905
    %v929 = vpop.f32.mrf.mxu0
    %v930 = vadd.f32 %v783, %v929
    %v931 = vpop.f32.mrf.mxu0
    %v932 = vadd.f32 %v783, %v931
    %933 = vdwg.mxu0
    %v936 = vrot.slane %v916, 7
    %v937 = vrot.slane %v930, 7
    %vm940 = vcmask 1040384
    %v941 = vsel %vm940, %v876, %v936
    %v942 = vsel %vm940, %v890, %v937
    %v945 = vrot.slane %v876, 1
    %v946 = vrot.slane %v890, 1
    %v949 = vsel %vm940, %v945, %v916
    %v950 = vsel %vm940, %v946, %v930
    %v951 = vrot.slane %v876, 2
    %v952 = vrot.slane %v890, 2
    %v955 = vrot.slane %v916, 1
    %v956 = vrot.slane %v930, 1
    %v959 = vsel %vm940, %v951, %v955
    %v960 = vsel %vm940, %v952, %v956
    %v961 = vrot.slane %v876, 3
    %v962 = vrot.slane %v890, 3
    %v965 = vrot.slane %v916, 2
    %v966 = vrot.slane %v930, 2
    %v969 = vsel %vm940, %v961, %v965
    %v970 = vsel %vm940, %v962, %v966
    %v971 = vrot.slane %v876, 4
    %v972 = vrot.slane %v890, 4
    %v975 = vrot.slane %v916, 3
    %v976 = vrot.slane %v930, 3
    %v979 = vsel %vm940, %v971, %v975
    %v980 = vsel %vm940, %v972, %v976
    %v981 = vrot.slane %v876, 5
    %v982 = vrot.slane %v890, 5
    %v985 = vrot.slane %v916, 4
    %v986 = vrot.slane %v930, 4
    %v989 = vsel %vm940, %v981, %v985
    %v990 = vsel %vm940, %v982, %v986
    %v991 = vrot.slane %v876, 6
    %v992 = vrot.slane %v890, 6
    %v995 = vrot.slane %v916, 5
    %v996 = vrot.slane %v930, 5
    %v999 = vsel %vm940, %v991, %v995
    %v1000 = vsel %vm940, %v992, %v996
    %v1001 = vrot.slane %v876, 7
    %v1002 = vrot.slane %v890, 7
    %v1005 = vrot.slane %v916, 6
    %v1006 = vrot.slane %v930, 6
    %v1009 = vsel %vm940, %v1001, %v1005
    %v1010 = vsel %vm940, %v1002, %v1006
    %v1013 = vrot.slane %v918, 7
    %v1014 = vrot.slane %v932, 7
    %v1017 = vsel %vm940, %v878, %v1013
    %v1018 = vsel %vm940, %v892, %v1014
    %v1021 = vrot.slane %v878, 1
    %v1022 = vrot.slane %v892, 1
    %v1025 = vsel %vm940, %v1021, %v918
    %v1026 = vsel %vm940, %v1022, %v932
    %v1027 = vrot.slane %v878, 2
    %v1028 = vrot.slane %v892, 2
    %v1031 = vrot.slane %v918, 1
    %v1032 = vrot.slane %v932, 1
    %v1035 = vsel %vm940, %v1027, %v1031
    %v1036 = vsel %vm940, %v1028, %v1032
    %v1037 = vrot.slane %v878, 3
    %v1038 = vrot.slane %v892, 3
    %v1041 = vrot.slane %v918, 2
    %v1042 = vrot.slane %v932, 2
    %v1045 = vsel %vm940, %v1037, %v1041
    %v1046 = vsel %vm940, %v1038, %v1042
    %v1047 = vld [vmem:[%s5] sm:$0xff]
    %v1048 = vld [vmem:[%s5 + $0x8] sm:$0xff]
    %v1049 = vld [vmem:[%s5 + $0x10] sm:$0xff]
    %v1050 = vld [vmem:[%s5 + $0x18] sm:$0xff]
    %v1051 = vld [vmem:[%s5 + $0x20] sm:$0xff]
    %v1052 = vld [vmem:[%s5 + $0x28] sm:$0xff]
    %v1053 = vld [vmem:[%s5 + $0x30] sm:$0xff]
    %v1054 = vld [vmem:[%s5 + $0x38] sm:$0xff]
    %v1063 = vunpack.c.l.b16 %v1047
    %v1064 = vunpack.c.h.b16 %v1047
    %v1065 = vunpack.c.l.b16 %v1048
    %v1066 = vunpack.c.h.b16 %v1048
    %v1067 = vunpack.c.l.b16 %v1049
    %v1068 = vunpack.c.h.b16 %v1049
    %v1069 = vunpack.c.l.b16 %v1050
    %v1070 = vunpack.c.h.b16 %v1050
    %v1071 = vunpack.c.l.b16 %v1051
    %v1072 = vunpack.c.h.b16 %v1051
    %v1073 = vunpack.c.l.b16 %v1052
    %v1074 = vunpack.c.h.b16 %v1052
    %v1075 = vunpack.c.l.b16 %v1053
    %v1076 = vunpack.c.h.b16 %v1053
    %v1077 = vunpack.c.l.b16 %v1054
    %v1078 = vunpack.c.h.b16 %v1054
    %v1079 = vpack.c.b16 %v1065, %v1063
    %v1080 = vpack.c.b16 %v1066, %v1064
    %v1081 = vpack.c.b16 %v1069, %v1067
    %v1082 = vpack.c.b16 %v1070, %v1068
    %v1083 = vpack.c.b16 %v1073, %v1071
    %v1084 = vpack.c.b16 %v1074, %v1072
    %v1085 = vpack.c.b16 %v1077, %v1075
    %v1086 = vpack.c.b16 %v1078, %v1076
    %v1096 = vsel %vm487, 0, 0
    %1098 = vmatpush.bf16.msra.mxu0 0
    %1099 = vmatpush.bf16.msra.mxu0 0
    %1100 = vmatpush.bf16.msra.mxu0 0
    %1101 = vmatpush.bf16.msra.mxu0 0
    %1102 = vmatpush.bf16.msra.mxu0 %v1085
    %1103 = vmatpush.bf16.msra.mxu0 %v1083
    %1104 = vmatpush.bf16.msra.mxu0 %v1081
    %1105 = vmatpush.bf16.msra.mxu0 %v1079
    %1106 = vmatmul.bf16.gmra.mxu0 %v1096
    %v1107 = vpop.f32.mrf.mxu0
    %v1108 = vadd.f32 0.0, %v1107
    %v1109 = vpop.f32.mrf.mxu0
    %1110 = vdwg.mxu0
    %1111 = vmatpush.bf16.msra.mxu0 0
    %1112 = vmatpush.bf16.msra.mxu0 0
    %1113 = vmatpush.bf16.msra.mxu0 0
    %1114 = vmatpush.bf16.msra.mxu0 0
    %1115 = vmatpush.bf16.msra.mxu0 %v1086
    %1116 = vmatpush.bf16.msra.mxu0 %v1084
    %1117 = vmatpush.bf16.msra.mxu0 %v1082
    %1118 = vmatpush.bf16.msra.mxu0 %v1080
    %1119 = vmatmul.bf16.gmra.mxu0 %v1096
    %v1120 = vpop.f32.mrf.mxu0
    %v1121 = vadd.f32 0.0, %v1120
    %v1122 = vpop.f32.mrf.mxu0
    %1123 = vdwg.mxu0
    %v1124 = vadd.f32 %v941, %v1108
    %v1125 = vadd.f32 %v942, %v1121
    %v1126 = vxor.u32 %v1124, 2147483648
    %v1127 = vxor.u32 %v1125, 2147483648
    %v1128 = vmul.f32 %v1126, 1.442695
    %v1129 = vpow.pop %v1128
    %v1130 = vmul.f32 %v1127, 1.442695
    %v1131 = vpow.pop %v1130
    %v1132 = vadd.f32 %v1129, 1.0
    %v1133 = vadd.f32 %v1131, 1.0
    %v1134 = vrcp.pop %v1132
    %v1135 = vmul.f32 %v1132, %v1134
    %v1136 = vsub.f32 1.0, %v1135
    %v1137 = vmul.f32 %v1134, %v1136
    %v1138 = vadd.f32 %v1134, %v1137
    %vm1139 = vweird.f32 %v1132
    %vm1140 = vweird.f32 %v1134
    %vm1141 = vmor %vm1139, %vm1140
    %v1142 = vsel %vm1141, %v1134, %v1138
    %v1143 = vand.u32 2147483647, %v1132
    %vm1144 = vcmp.eq.f32.partialorder %v1143, 8.507059e+37
    %v1145 = vand.u32 %v1132, 2147483648
    %v1146 = vor.u32 1.1754944e-38, %v1145
    %v1147 = vsel %vm1144, %v1146, %v1142
    %v1148 = vmul.f32 1.0, %v1147
    %v1149 = vrcp.pop %v1133
    %v1150 = vmul.f32 %v1133, %v1149
    %v1151 = vsub.f32 1.0, %v1150
    %v1152 = vmul.f32 %v1149, %v1151
    %v1153 = vadd.f32 %v1149, %v1152
    %vm1154 = vweird.f32 %v1133
    %vm1155 = vweird.f32 %v1149
    %vm1156 = vmor %vm1154, %vm1155
    %v1157 = vsel %vm1156, %v1149, %v1153
    %v1158 = vand.u32 2147483647, %v1133
    %vm1159 = vcmp.eq.f32.partialorder %v1158, 8.507059e+37
    %v1160 = vand.u32 %v1133, 2147483648
    %v1161 = vor.u32 1.1754944e-38, %v1160
    %v1162 = vsel %vm1159, %v1161, %v1157
    %v1163 = vmul.f32 1.0, %v1162
    %v1164 = vtanh.pop %v1125
    %v1165 = vmul.f32 %v1148, 0.0
    %1167 = vrot.lane.b32.xlu0 %v1164, 64
    %v1168 = vpop.permute.xlu0 %1167
    %v1170 = vmul.f32 %v1148, %v1168
    %1172 = vrot.lane.b32.xlu0 %v1170, 64
    %v1173 = vpop.permute.xlu0 %1172
    %v1175 = vadd.f32 %v1165, %v1173
    %v1176 = vtanh.pop %v1175
    %1178 = vrot.lane.b32.xlu0 %v1176, 64
    %v1179 = vpop.permute.xlu0 %1178
    %v1181 = vmul.f32 %v1163, %v1179
    %v1182 = vpack.c.bf16 %v1181, %v1181
    %v1184 = vsel %vm487, %v1182, 0
    %1186 = vmatpush.bf16.msra.mxu0 0
    %1187 = vmatpush.bf16.msra.mxu0 0
    %1188 = vmatpush.bf16.msra.mxu0 0
    %1189 = vmatpush.bf16.msra.mxu0 0
    %1190 = vmatpush.bf16.msra.mxu0 %v1085
    %1191 = vmatpush.bf16.msra.mxu0 %v1083
    %1192 = vmatpush.bf16.msra.mxu0 %v1081
    %1193 = vmatpush.bf16.msra.mxu0 %v1079
    %1194 = vmatmul.bf16.gmra.mxu0 %v1184
    %v1195 = vpop.f32.mrf.mxu0
    %v1196 = vadd.f32 0.0, %v1195
    %v1197 = vpop.f32.mrf.mxu0
    %1198 = vdwg.mxu0
    %1199 = vmatpush.bf16.msra.mxu0 0
    %1200 = vmatpush.bf16.msra.mxu0 0
    %1201 = vmatpush.bf16.msra.mxu0 0
    %1202 = vmatpush.bf16.msra.mxu0 0
    %1203 = vmatpush.bf16.msra.mxu0 %v1086
    %1204 = vmatpush.bf16.msra.mxu0 %v1084
    %1205 = vmatpush.bf16.msra.mxu0 %v1082
    %1206 = vmatpush.bf16.msra.mxu0 %v1080
    %1207 = vmatmul.bf16.gmra.mxu0 %v1184
    %v1208 = vpop.f32.mrf.mxu0
    %v1209 = vadd.f32 0.0, %v1208
    %v1210 = vpop.f32.mrf.mxu0
    %1211 = vdwg.mxu0
    %v1212 = vadd.f32 %v949, %v1196
    %v1213 = vadd.f32 %v950, %v1209
    %v1214 = vxor.u32 %v1212, 2147483648
    %v1215 = vxor.u32 %v1213, 2147483648
    %v1216 = vmul.f32 %v1214, 1.442695
    %v1217 = vpow.pop %v1216
    %v1218 = vmul.f32 %v1215, 1.442695
    %v1219 = vpow.pop %v1218
    %v1220 = vadd.f32 %v1217, 1.0
    %v1221 = vadd.f32 %v1219, 1.0
    %v1222 = vrcp.pop %v1220
    %v1223 = vmul.f32 %v1220, %v1222
    %v1224 = vsub.f32 1.0, %v1223
    %v1225 = vmul.f32 %v1222, %v1224
    %v1226 = vadd.f32 %v1222, %v1225
    %vm1227 = vweird.f32 %v1220
    %vm1228 = vweird.f32 %v1222
    %vm1229 = vmor %vm1227, %vm1228
    %v1230 = vsel %vm1229, %v1222, %v1226
    %v1231 = vand.u32 2147483647, %v1220
    %vm1232 = vcmp.eq.f32.partialorder %v1231, 8.507059e+37
    %v1233 = vand.u32 %v1220, 2147483648
    %v1234 = vor.u32 1.1754944e-38, %v1233
    %v1235 = vsel %vm1232, %v1234, %v1230
    %v1236 = vmul.f32 1.0, %v1235
    %v1237 = vrcp.pop %v1221
    %v1238 = vmul.f32 %v1221, %v1237
    %v1239 = vsub.f32 1.0, %v1238
    %v1240 = vmul.f32 %v1237, %v1239
    %v1241 = vadd.f32 %v1237, %v1240
    %vm1242 = vweird.f32 %v1221
    %vm1243 = vweird.f32 %v1237
    %vm1244 = vmor %vm1242, %vm1243
    %v1245 = vsel %vm1244, %v1237, %v1241
    %v1246 = vand.u32 2147483647, %v1221
    %vm1247 = vcmp.eq.f32.partialorder %v1246, 8.507059e+37
    %v1248 = vand.u32 %v1221, 2147483648
    %v1249 = vor.u32 1.1754944e-38, %v1248
    %v1250 = vsel %vm1247, %v1249, %v1245
    %v1251 = vmul.f32 1.0, %v1250
    %v1252 = vtanh.pop %v1213
    %v1253 = vmul.f32 %v1236, %v1175
    %1255 = vrot.lane.b32.xlu0 %v1252, 64
    %v1256 = vpop.permute.xlu0 %1255
    %v1258 = vmul.f32 %v1236, %v1256
    %1260 = vrot.lane.b32.xlu0 %v1258, 64
    %v1261 = vpop.permute.xlu0 %1260
    %v1263 = vadd.f32 %v1253, %v1261
    %v1264 = vtanh.pop %v1263
    %1266 = vrot.lane.b32.xlu0 %v1264, 64
    %v1267 = vpop.permute.xlu0 %1266
    %v1269 = vmul.f32 %v1251, %v1267
    %v1270 = vpack.c.bf16 %v1269, %v1269
    %v1272 = vsel %vm487, %v1270, 0
    %1274 = vmatpush.bf16.msra.mxu0 0
    %1275 = vmatpush.bf16.msra.mxu0 0
    %1276 = vmatpush.bf16.msra.mxu0 0
    %1277 = vmatpush.bf16.msra.mxu0 0
    %1278 = vmatpush.bf16.msra.mxu0 %v1085
    %1279 = vmatpush.bf16.msra.mxu0 %v1083
    %1280 = vmatpush.bf16.msra.mxu0 %v1081
    %1281 = vmatpush.bf16.msra.mxu0 %v1079
    %1282 = vmatmul.bf16.gmra.mxu0 %v1272
    %v1283 = vpop.f32.mrf.mxu0
    %v1284 = vadd.f32 0.0, %v1283
    %v1285 = vpop.f32.mrf.mxu0
    %1286 = vdwg.mxu0
    %1287 = vmatpush.bf16.msra.mxu0 0
    %1288 = vmatpush.bf16.msra.mxu0 0
    %1289 = vmatpush.bf16.msra.mxu0 0
    %1290 = vmatpush.bf16.msra.mxu0 0
    %1291 = vmatpush.bf16.msra.mxu0 %v1086
    %1292 = vmatpush.bf16.msra.mxu0 %v1084
    %1293 = vmatpush.bf16.msra.mxu0 %v1082
    %1294 = vmatpush.bf16.msra.mxu0 %v1080
    %1295 = vmatmul.bf16.gmra.mxu0 %v1272
    %v1296 = vpop.f32.mrf.mxu0
    %v1297 = vadd.f32 0.0, %v1296
    %v1298 = vpop.f32.mrf.mxu0
    %1299 = vdwg.mxu0
    %v1300 = vadd.f32 %v959, %v1284
    %v1301 = vadd.f32 %v960, %v1297
    %v1302 = vxor.u32 %v1300, 2147483648
    %v1303 = vxor.u32 %v1301, 2147483648
    %v1304 = vmul.f32 %v1302, 1.442695
    %v1305 = vpow.pop %v1304
    %v1306 = vmul.f32 %v1303, 1.442695
    %v1307 = vpow.pop %v1306
    %v1308 = vadd.f32 %v1305, 1.0
    %v1309 = vadd.f32 %v1307, 1.0
    %v1310 = vrcp.pop %v1308
    %v1311 = vmul.f32 %v1308, %v1310
    %v1312 = vsub.f32 1.0, %v1311
    %v1313 = vmul.f32 %v1310, %v1312
    %v1314 = vadd.f32 %v1310, %v1313
    %vm1315 = vweird.f32 %v1308
    %vm1316 = vweird.f32 %v1310
    %vm1317 = vmor %vm1315, %vm1316
    %v1318 = vsel %vm1317, %v1310, %v1314
    %v1319 = vand.u32 2147483647, %v1308
    %vm1320 = vcmp.eq.f32.partialorder %v1319, 8.507059e+37
    %v1321 = vand.u32 %v1308, 2147483648
    %v1322 = vor.u32 1.1754944e-38, %v1321
    %v1323 = vsel %vm1320, %v1322, %v1318
    %v1324 = vmul.f32 1.0, %v1323
    %v1325 = vrcp.pop %v1309
    %v1326 = vmul.f32 %v1309, %v1325
    %v1327 = vsub.f32 1.0, %v1326
    %v1328 = vmul.f32 %v1325, %v1327
    %v1329 = vadd.f32 %v1325, %v1328
    %vm1330 = vweird.f32 %v1309
    %vm1331 = vweird.f32 %v1325
    %vm1332 = vmor %vm1330, %vm1331
    %v1333 = vsel %vm1332, %v1325, %v1329
    %v1334 = vand.u32 2147483647, %v1309
    %vm1335 = vcmp.eq.f32.partialorder %v1334, 8.507059e+37
    %v1336 = vand.u32 %v1309, 2147483648
    %v1337 = vor.u32 1.1754944e-38, %v1336
    %v1338 = vsel %vm1335, %v1337, %v1333
    %v1339 = vmul.f32 1.0, %v1338
    %v1340 = vtanh.pop %v1301
    %v1341 = vmul.f32 %v1324, %v1263
    %1343 = vrot.lane.b32.xlu0 %v1340, 64
    %v1344 = vpop.permute.xlu0 %1343
    %v1346 = vmul.f32 %v1324, %v1344
    %1348 = vrot.lane.b32.xlu0 %v1346, 64
    %v1349 = vpop.permute.xlu0 %1348
    %v1351 = vadd.f32 %v1341, %v1349
    %v1352 = vtanh.pop %v1351
    %1354 = vrot.lane.b32.xlu0 %v1352, 64
    %v1355 = vpop.permute.xlu0 %1354
    %v1357 = vmul.f32 %v1339, %v1355
    %v1358 = vpack.c.bf16 %v1357, %v1357
    %v1360 = vsel %vm487, %v1358, 0
    %1362 = vmatpush.bf16.msra.mxu0 0
    %1363 = vmatpush.bf16.msra.mxu0 0
    %1364 = vmatpush.bf16.msra.mxu0 0
    %1365 = vmatpush.bf16.msra.mxu0 0
    %1366 = vmatpush.bf16.msra.mxu0 %v1085
    %1367 = vmatpush.bf16.msra.mxu0 %v1083
    %1368 = vmatpush.bf16.msra.mxu0 %v1081
    %1369 = vmatpush.bf16.msra.mxu0 %v1079
    %1370 = vmatmul.bf16.gmra.mxu0 %v1360
    %v1371 = vpop.f32.mrf.mxu0
    %v1372 = vadd.f32 0.0, %v1371
    %v1373 = vpop.f32.mrf.mxu0
    %1374 = vdwg.mxu0
    %1375 = vmatpush.bf16.msra.mxu0 0
    %1376 = vmatpush.bf16.msra.mxu0 0
    %1377 = vmatpush.bf16.msra.mxu0 0
    %1378 = vmatpush.bf16.msra.mxu0 0
    %1379 = vmatpush.bf16.msra.mxu0 %v1086
    %1380 = vmatpush.bf16.msra.mxu0 %v1084
    %1381 = vmatpush.bf16.msra.mxu0 %v1082
    %1382 = vmatpush.bf16.msra.mxu0 %v1080
    %1383 = vmatmul.bf16.gmra.mxu0 %v1360
    %v1384 = vpop.f32.mrf.mxu0
    %v1385 = vadd.f32 0.0, %v1384
    %v1386 = vpop.f32.mrf.mxu0
    %1387 = vdwg.mxu0
    %v1388 = vadd.f32 %v969, %v1372
    %v1389 = vadd.f32 %v970, %v1385
    %v1390 = vxor.u32 %v1388, 2147483648
    %v1391 = vxor.u32 %v1389, 2147483648
    %v1392 = vmul.f32 %v1390, 1.442695
    %v1393 = vpow.pop %v1392
    %v1394 = vmul.f32 %v1391, 1.442695
    %v1395 = vpow.pop %v1394
    %v1396 = vadd.f32 %v1393, 1.0
    %v1397 = vadd.f32 %v1395, 1.0
    %v1398 = vrcp.pop %v1396
    %v1399 = vmul.f32 %v1396, %v1398
    %v1400 = vsub.f32 1.0, %v1399
    %v1401 = vmul.f32 %v1398, %v1400
    %v1402 = vadd.f32 %v1398, %v1401
    %vm1403 = vweird.f32 %v1396
    %vm1404 = vweird.f32 %v1398
    %vm1405 = vmor %vm1403, %vm1404
    %v1406 = vsel %vm1405, %v1398, %v1402
    %v1407 = vand.u32 2147483647, %v1396
    %vm1408 = vcmp.eq.f32.partialorder %v1407, 8.507059e+37
    %v1409 = vand.u32 %v1396, 2147483648
    %v1410 = vor.u32 1.1754944e-38, %v1409
    %v1411 = vsel %vm1408, %v1410, %v1406
    %v1412 = vmul.f32 1.0, %v1411
    %v1413 = vrcp.pop %v1397
    %v1414 = vmul.f32 %v1397, %v1413
    %v1415 = vsub.f32 1.0, %v1414
    %v1416 = vmul.f32 %v1413, %v1415
    %v1417 = vadd.f32 %v1413, %v1416
    %vm1418 = vweird.f32 %v1397
    %vm1419 = vweird.f32 %v1413
    %vm1420 = vmor %vm1418, %vm1419
    %v1421 = vsel %vm1420, %v1413, %v1417
    %v1422 = vand.u32 2147483647, %v1397
    %vm1423 = vcmp.eq.f32.partialorder %v1422, 8.507059e+37
    %v1424 = vand.u32 %v1397, 2147483648
    %v1425 = vor.u32 1.1754944e-38, %v1424
    %v1426 = vsel %vm1423, %v1425, %v1421
    %v1427 = vmul.f32 1.0, %v1426
    %v1428 = vtanh.pop %v1389
    %v1429 = vmul.f32 %v1412, %v1351
    %1431 = vrot.lane.b32.xlu0 %v1428, 64
    %v1432 = vpop.permute.xlu0 %1431
    %v1434 = vmul.f32 %v1412, %v1432
    %1436 = vrot.lane.b32.xlu0 %v1434, 64
    %v1437 = vpop.permute.xlu0 %1436
    %v1439 = vadd.f32 %v1429, %v1437
    %v1440 = vtanh.pop %v1439
    %1442 = vrot.lane.b32.xlu0 %v1440, 64
    %v1443 = vpop.permute.xlu0 %1442
    %v1445 = vmul.f32 %v1427, %v1443
    %v1446 = vpack.c.bf16 %v1445, %v1445
    %v1448 = vsel %vm487, %v1446, 0
    %1450 = vmatpush.bf16.msra.mxu0 0
    %1451 = vmatpush.bf16.msra.mxu0 0
    %1452 = vmatpush.bf16.msra.mxu0 0
    %1453 = vmatpush.bf16.msra.mxu0 0
    %1454 = vmatpush.bf16.msra.mxu0 %v1085
    %1455 = vmatpush.bf16.msra.mxu0 %v1083
    %1456 = vmatpush.bf16.msra.mxu0 %v1081
    %1457 = vmatpush.bf16.msra.mxu0 %v1079
    %1458 = vmatmul.bf16.gmra.mxu0 %v1448
    %v1459 = vpop.f32.mrf.mxu0
    %v1460 = vadd.f32 0.0, %v1459
    %v1461 = vpop.f32.mrf.mxu0
    %1462 = vdwg.mxu0
    %1463 = vmatpush.bf16.msra.mxu0 0
    %1464 = vmatpush.bf16.msra.mxu0 0
    %1465 = vmatpush.bf16.msra.mxu0 0
    %1466 = vmatpush.bf16.msra.mxu0 0
    %1467 = vmatpush.bf16.msra.mxu0 %v1086
    %1468 = vmatpush.bf16.msra.mxu0 %v1084
    %1469 = vmatpush.bf16.msra.mxu0 %v1082
    %1470 = vmatpush.bf16.msra.mxu0 %v1080
    %1471 = vmatmul.bf16.gmra.mxu0 %v1448
    %v1472 = vpop.f32.mrf.mxu0
    %v1473 = vadd.f32 0.0, %v1472
    %v1474 = vpop.f32.mrf.mxu0
    %1475 = vdwg.mxu0
    %v1476 = vadd.f32 %v979, %v1460
    %v1477 = vadd.f32 %v980, %v1473
    %v1478 = vxor.u32 %v1476, 2147483648
    %v1479 = vxor.u32 %v1477, 2147483648
    %v1480 = vmul.f32 %v1478, 1.442695
    %v1481 = vpow.pop %v1480
    %v1482 = vmul.f32 %v1479, 1.442695
    %v1483 = vpow.pop %v1482
    %v1484 = vadd.f32 %v1481, 1.0
    %v1485 = vadd.f32 %v1483, 1.0
    %v1486 = vrcp.pop %v1484
    %v1487 = vmul.f32 %v1484, %v1486
    %v1488 = vsub.f32 1.0, %v1487
    %v1489 = vmul.f32 %v1486, %v1488
    %v1490 = vadd.f32 %v1486, %v1489
    %vm1491 = vweird.f32 %v1484
    %vm1492 = vweird.f32 %v1486
    %vm1493 = vmor %vm1491, %vm1492
    %v1494 = vsel %vm1493, %v1486, %v1490
    %v1495 = vand.u32 2147483647, %v1484
    %vm1496 = vcmp.eq.f32.partialorder %v1495, 8.507059e+37
    %v1497 = vand.u32 %v1484, 2147483648
    %v1498 = vor.u32 1.1754944e-38, %v1497
    %v1499 = vsel %vm1496, %v1498, %v1494
    %v1500 = vmul.f32 1.0, %v1499
    %v1501 = vrcp.pop %v1485
    %v1502 = vmul.f32 %v1485, %v1501
    %v1503 = vsub.f32 1.0, %v1502
    %v1504 = vmul.f32 %v1501, %v1503
    %v1505 = vadd.f32 %v1501, %v1504
    %vm1506 = vweird.f32 %v1485
    %vm1507 = vweird.f32 %v1501
    %vm1508 = vmor %vm1506, %vm1507
    %v1509 = vsel %vm1508, %v1501, %v1505
    %v1510 = vand.u32 2147483647, %v1485
    %vm1511 = vcmp.eq.f32.partialorder %v1510, 8.507059e+37
    %v1512 = vand.u32 %v1485, 2147483648
    %v1513 = vor.u32 1.1754944e-38, %v1512
    %v1514 = vsel %vm1511, %v1513, %v1509
    %v1515 = vmul.f32 1.0, %v1514
    %v1516 = vtanh.pop %v1477
    %v1517 = vmul.f32 %v1500, %v1439
    %1519 = vrot.lane.b32.xlu0 %v1516, 64
    %v1520 = vpop.permute.xlu0 %1519
    %v1522 = vmul.f32 %v1500, %v1520
    %1524 = vrot.lane.b32.xlu0 %v1522, 64
    %v1525 = vpop.permute.xlu0 %1524
    %v1527 = vadd.f32 %v1517, %v1525
    %v1528 = vtanh.pop %v1527
    %1530 = vrot.lane.b32.xlu0 %v1528, 64
    %v1531 = vpop.permute.xlu0 %1530
    %v1533 = vmul.f32 %v1515, %v1531
    %v1534 = vpack.c.bf16 %v1533, %v1533
    %v1536 = vsel %vm487, %v1534, 0
    %1538 = vmatpush.bf16.msra.mxu0 0
    %1539 = vmatpush.bf16.msra.mxu0 0
    %1540 = vmatpush.bf16.msra.mxu0 0
    %1541 = vmatpush.bf16.msra.mxu0 0
    %1542 = vmatpush.bf16.msra.mxu0 %v1085
    %1543 = vmatpush.bf16.msra.mxu0 %v1083
    %1544 = vmatpush.bf16.msra.mxu0 %v1081
    %1545 = vmatpush.bf16.msra.mxu0 %v1079
    %1546 = vmatmul.bf16.gmra.mxu0 %v1536
    %v1547 = vpop.f32.mrf.mxu0
    %v1548 = vadd.f32 0.0, %v1547
    %v1549 = vpop.f32.mrf.mxu0
    %1550 = vdwg.mxu0
    %1551 = vmatpush.bf16.msra.mxu0 0
    %1552 = vmatpush.bf16.msra.mxu0 0
    %1553 = vmatpush.bf16.msra.mxu0 0
    %1554 = vmatpush.bf16.msra.mxu0 0
    %1555 = vmatpush.bf16.msra.mxu0 %v1086
    %1556 = vmatpush.bf16.msra.mxu0 %v1084
    %1557 = vmatpush.bf16.msra.mxu0 %v1082
    %1558 = vmatpush.bf16.msra.mxu0 %v1080
    %1559 = vmatmul.bf16.gmra.mxu0 %v1536
    %v1560 = vpop.f32.mrf.mxu0
    %v1561 = vadd.f32 0.0, %v1560
    %v1562 = vpop.f32.mrf.mxu0
    %1563 = vdwg.mxu0
    %v1564 = vadd.f32 %v989, %v1548
    %v1565 = vadd.f32 %v990, %v1561
    %v1566 = vxor.u32 %v1564, 2147483648
    %v1567 = vxor.u32 %v1565, 2147483648
    %v1568 = vmul.f32 %v1566, 1.442695
    %v1569 = vpow.pop %v1568
    %v1570 = vmul.f32 %v1567, 1.442695
    %v1571 = vpow.pop %v1570
    %v1572 = vadd.f32 %v1569, 1.0
    %v1573 = vadd.f32 %v1571, 1.0
    %v1574 = vrcp.pop %v1572
    %v1575 = vmul.f32 %v1572, %v1574
    %v1576 = vsub.f32 1.0, %v1575
    %v1577 = vmul.f32 %v1574, %v1576
    %v1578 = vadd.f32 %v1574, %v1577
    %vm1579 = vweird.f32 %v1572
    %vm1580 = vweird.f32 %v1574
    %vm1581 = vmor %vm1579, %vm1580
    %v1582 = vsel %vm1581, %v1574, %v1578
    %v1583 = vand.u32 2147483647, %v1572
    %vm1584 = vcmp.eq.f32.partialorder %v1583, 8.507059e+37
    %v1585 = vand.u32 %v1572, 2147483648
    %v1586 = vor.u32 1.1754944e-38, %v1585
    %v1587 = vsel %vm1584, %v1586, %v1582
    %v1588 = vmul.f32 1.0, %v1587
    %v1589 = vrcp.pop %v1573
    %v1590 = vmul.f32 %v1573, %v1589
    %v1591 = vsub.f32 1.0, %v1590
    %v1592 = vmul.f32 %v1589, %v1591
    %v1593 = vadd.f32 %v1589, %v1592
    %vm1594 = vweird.f32 %v1573
    %vm1595 = vweird.f32 %v1589
    %vm1596 = vmor %vm1594, %vm1595
    %v1597 = vsel %vm1596, %v1589, %v1593
    %v1598 = vand.u32 2147483647, %v1573
    %vm1599 = vcmp.eq.f32.partialorder %v1598, 8.507059e+37
    %v1600 = vand.u32 %v1573, 2147483648
    %v1601 = vor.u32 1.1754944e-38, %v1600
    %v1602 = vsel %vm1599, %v1601, %v1597
    %v1603 = vmul.f32 1.0, %v1602
    %v1604 = vtanh.pop %v1565
    %v1605 = vmul.f32 %v1588, %v1527
    %1607 = vrot.lane.b32.xlu0 %v1604, 64
    %v1608 = vpop.permute.xlu0 %1607
    %v1610 = vmul.f32 %v1588, %v1608
    %1612 = vrot.lane.b32.xlu0 %v1610, 64
    %v1613 = vpop.permute.xlu0 %1612
    %v1615 = vadd.f32 %v1605, %v1613
    %v1616 = vtanh.pop %v1615
    %1618 = vrot.lane.b32.xlu0 %v1616, 64
    %v1619 = vpop.permute.xlu0 %1618
    %v1621 = vmul.f32 %v1603, %v1619
    %v1622 = vpack.c.bf16 %v1621, %v1621
    %v1624 = vsel %vm487, %v1622, 0
    %1626 = vmatpush.bf16.msra.mxu0 0
    %1627 = vmatpush.bf16.msra.mxu0 0
    %1628 = vmatpush.bf16.msra.mxu0 0
    %1629 = vmatpush.bf16.msra.mxu0 0
    %1630 = vmatpush.bf16.msra.mxu0 %v1085
    %1631 = vmatpush.bf16.msra.mxu0 %v1083
    %1632 = vmatpush.bf16.msra.mxu0 %v1081
    %1633 = vmatpush.bf16.msra.mxu0 %v1079
    %1634 = vmatmul.bf16.gmra.mxu0 %v1624
    %v1635 = vpop.f32.mrf.mxu0
    %v1636 = vadd.f32 0.0, %v1635
    %v1637 = vpop.f32.mrf.mxu0
    %1638 = vdwg.mxu0
    %1639 = vmatpush.bf16.msra.mxu0 0
    %1640 = vmatpush.bf16.msra.mxu0 0
    %1641 = vmatpush.bf16.msra.mxu0 0
    %1642 = vmatpush.bf16.msra.mxu0 0
    %1643 = vmatpush.bf16.msra.mxu0 %v1086
    %1644 = vmatpush.bf16.msra.mxu0 %v1084
    %1645 = vmatpush.bf16.msra.mxu0 %v1082
    %1646 = vmatpush.bf16.msra.mxu0 %v1080
    %1647 = vmatmul.bf16.gmra.mxu0 %v1624
    %v1648 = vpop.f32.mrf.mxu0
    %v1649 = vadd.f32 0.0, %v1648
    %v1650 = vpop.f32.mrf.mxu0
    %1651 = vdwg.mxu0
    %v1652 = vadd.f32 %v999, %v1636
    %v1653 = vadd.f32 %v1000, %v1649
    %v1654 = vxor.u32 %v1652, 2147483648
    %v1655 = vxor.u32 %v1653, 2147483648
    %v1656 = vmul.f32 %v1654, 1.442695
    %v1657 = vpow.pop %v1656
    %v1658 = vmul.f32 %v1655, 1.442695
    %v1659 = vpow.pop %v1658
    %v1660 = vadd.f32 %v1657, 1.0
    %v1661 = vadd.f32 %v1659, 1.0
    %v1662 = vrcp.pop %v1660
    %v1663 = vmul.f32 %v1660, %v1662
    %v1664 = vsub.f32 1.0, %v1663
    %v1665 = vmul.f32 %v1662, %v1664
    %v1666 = vadd.f32 %v1662, %v1665
    %vm1667 = vweird.f32 %v1660
    %vm1668 = vweird.f32 %v1662
    %vm1669 = vmor %vm1667, %vm1668
    %v1670 = vsel %vm1669, %v1662, %v1666
    %v1671 = vand.u32 2147483647, %v1660
    %vm1672 = vcmp.eq.f32.partialorder %v1671, 8.507059e+37
    %v1673 = vand.u32 %v1660, 2147483648
    %v1674 = vor.u32 1.1754944e-38, %v1673
    %v1675 = vsel %vm1672, %v1674, %v1670
    %v1676 = vmul.f32 1.0, %v1675
    %v1677 = vrcp.pop %v1661
    %v1678 = vmul.f32 %v1661, %v1677
    %v1679 = vsub.f32 1.0, %v1678
    %v1680 = vmul.f32 %v1677, %v1679
    %v1681 = vadd.f32 %v1677, %v1680
    %vm1682 = vweird.f32 %v1661
    %vm1683 = vweird.f32 %v1677
    %vm1684 = vmor %vm1682, %vm1683
    %v1685 = vsel %vm1684, %v1677, %v1681
    %v1686 = vand.u32 2147483647, %v1661
    %vm1687 = vcmp.eq.f32.partialorder %v1686, 8.507059e+37
    %v1688 = vand.u32 %v1661, 2147483648
    %v1689 = vor.u32 1.1754944e-38, %v1688
    %v1690 = vsel %vm1687, %v1689, %v1685
    %v1691 = vmul.f32 1.0, %v1690
    %v1692 = vtanh.pop %v1653
    %v1693 = vmul.f32 %v1676, %v1615
    %1695 = vrot.lane.b32.xlu0 %v1692, 64
    %v1696 = vpop.permute.xlu0 %1695
    %v1698 = vmul.f32 %v1676, %v1696
    %1700 = vrot.lane.b32.xlu0 %v1698, 64
    %v1701 = vpop.permute.xlu0 %1700
    %v1703 = vadd.f32 %v1693, %v1701
    %v1704 = vtanh.pop %v1703
    %1706 = vrot.lane.b32.xlu0 %v1704, 64
    %v1707 = vpop.permute.xlu0 %1706
    %v1709 = vmul.f32 %v1691, %v1707
    %v1710 = vpack.c.bf16 %v1709, %v1709
    %v1712 = vsel %vm487, %v1710, 0
    %1714 = vmatpush.bf16.msra.mxu0 0
    %1715 = vmatpush.bf16.msra.mxu0 0
    %1716 = vmatpush.bf16.msra.mxu0 0
    %1717 = vmatpush.bf16.msra.mxu0 0
    %1718 = vmatpush.bf16.msra.mxu0 %v1085
    %1719 = vmatpush.bf16.msra.mxu0 %v1083
    %1720 = vmatpush.bf16.msra.mxu0 %v1081
    %1721 = vmatpush.bf16.msra.mxu0 %v1079
    %1722 = vmatmul.bf16.gmra.mxu0 %v1712
    %v1723 = vpop.f32.mrf.mxu0
    %v1724 = vadd.f32 0.0, %v1723
    %v1725 = vpop.f32.mrf.mxu0
    %1726 = vdwg.mxu0
    %1727 = vmatpush.bf16.msra.mxu0 0
    %1728 = vmatpush.bf16.msra.mxu0 0
    %1729 = vmatpush.bf16.msra.mxu0 0
    %1730 = vmatpush.bf16.msra.mxu0 0
    %1731 = vmatpush.bf16.msra.mxu0 %v1086
    %1732 = vmatpush.bf16.msra.mxu0 %v1084
    %1733 = vmatpush.bf16.msra.mxu0 %v1082
    %1734 = vmatpush.bf16.msra.mxu0 %v1080
    %1735 = vmatmul.bf16.gmra.mxu0 %v1712
    %v1736 = vpop.f32.mrf.mxu0
    %v1737 = vadd.f32 0.0, %v1736
    %v1738 = vpop.f32.mrf.mxu0
    %1739 = vdwg.mxu0
    %v1740 = vadd.f32 %v1009, %v1724
    %v1741 = vadd.f32 %v1010, %v1737
    %v1742 = vxor.u32 %v1740, 2147483648
    %v1743 = vxor.u32 %v1741, 2147483648
    %v1744 = vmul.f32 %v1742, 1.442695
    %v1745 = vpow.pop %v1744
    %v1746 = vmul.f32 %v1743, 1.442695
    %v1747 = vpow.pop %v1746
    %v1748 = vadd.f32 %v1745, 1.0
    %v1749 = vadd.f32 %v1747, 1.0
    %v1750 = vrcp.pop %v1748
    %v1751 = vmul.f32 %v1748, %v1750
    %v1752 = vsub.f32 1.0, %v1751
    %v1753 = vmul.f32 %v1750, %v1752
    %v1754 = vadd.f32 %v1750, %v1753
    %vm1755 = vweird.f32 %v1748
    %vm1756 = vweird.f32 %v1750
    %vm1757 = vmor %vm1755, %vm1756
    %v1758 = vsel %vm1757, %v1750, %v1754
    %v1759 = vand.u32 2147483647, %v1748
    %vm1760 = vcmp.eq.f32.partialorder %v1759, 8.507059e+37
    %v1761 = vand.u32 %v1748, 2147483648
    %v1762 = vor.u32 1.1754944e-38, %v1761
    %v1763 = vsel %vm1760, %v1762, %v1758
    %v1764 = vmul.f32 1.0, %v1763
    %v1765 = vrcp.pop %v1749
    %v1766 = vmul.f32 %v1749, %v1765
    %v1767 = vsub.f32 1.0, %v1766
    %v1768 = vmul.f32 %v1765, %v1767
    %v1769 = vadd.f32 %v1765, %v1768
    %vm1770 = vweird.f32 %v1749
    %vm1771 = vweird.f32 %v1765
    %vm1772 = vmor %vm1770, %vm1771
    %v1773 = vsel %vm1772, %v1765, %v1769
    %v1774 = vand.u32 2147483647, %v1749
    %vm1775 = vcmp.eq.f32.partialorder %v1774, 8.507059e+37
    %v1776 = vand.u32 %v1749, 2147483648
    %v1777 = vor.u32 1.1754944e-38, %v1776
    %v1778 = vsel %vm1775, %v1777, %v1773
    %v1779 = vmul.f32 1.0, %v1778
    %v1780 = vtanh.pop %v1741
    %v1781 = vmul.f32 %v1764, %v1703
    %1783 = vrot.lane.b32.xlu0 %v1780, 64
    %v1784 = vpop.permute.xlu0 %1783
    %v1786 = vmul.f32 %v1764, %v1784
    %1788 = vrot.lane.b32.xlu0 %v1786, 64
    %v1789 = vpop.permute.xlu0 %1788
    %v1791 = vadd.f32 %v1781, %v1789
    %v1792 = vtanh.pop %v1791
    %1794 = vrot.lane.b32.xlu0 %v1792, 64
    %v1795 = vpop.permute.xlu0 %1794
    %v1797 = vmul.f32 %v1779, %v1795
    %v1798 = vpack.c.bf16 %v1797, %v1797
    %v1800 = vsel %vm487, %v1798, 0
    %1802 = vmatpush.bf16.msra.mxu0 0
    %1803 = vmatpush.bf16.msra.mxu0 0
    %1804 = vmatpush.bf16.msra.mxu0 0
    %1805 = vmatpush.bf16.msra.mxu0 0
    %1806 = vmatpush.bf16.msra.mxu0 %v1085
    %1807 = vmatpush.bf16.msra.mxu0 %v1083
    %1808 = vmatpush.bf16.msra.mxu0 %v1081
    %1809 = vmatpush.bf16.msra.mxu0 %v1079
    %1810 = vmatmul.bf16.gmra.mxu0 %v1800
    %v1811 = vpop.f32.mrf.mxu0
    %v1812 = vadd.f32 0.0, %v1811
    %v1813 = vpop.f32.mrf.mxu0
    %1814 = vdwg.mxu0
    %1815 = vmatpush.bf16.msra.mxu0 0
    %1816 = vmatpush.bf16.msra.mxu0 0
    %1817 = vmatpush.bf16.msra.mxu0 0
    %1818 = vmatpush.bf16.msra.mxu0 0
    %1819 = vmatpush.bf16.msra.mxu0 %v1086
    %1820 = vmatpush.bf16.msra.mxu0 %v1084
    %1821 = vmatpush.bf16.msra.mxu0 %v1082
    %1822 = vmatpush.bf16.msra.mxu0 %v1080
    %1823 = vmatmul.bf16.gmra.mxu0 %v1800
    %v1824 = vpop.f32.mrf.mxu0
    %v1825 = vadd.f32 0.0, %v1824
    %v1826 = vpop.f32.mrf.mxu0
    %1827 = vdwg.mxu0
    %v1828 = vadd.f32 %v1017, %v1812
    %v1829 = vadd.f32 %v1018, %v1825
    %v1830 = vxor.u32 %v1828, 2147483648
    %v1831 = vxor.u32 %v1829, 2147483648
    %v1832 = vmul.f32 %v1830, 1.442695
    %v1833 = vpow.pop %v1832
    %v1834 = vmul.f32 %v1831, 1.442695
    %v1835 = vpow.pop %v1834
    %v1836 = vadd.f32 %v1833, 1.0
    %v1837 = vadd.f32 %v1835, 1.0
    %v1838 = vrcp.pop %v1836
    %v1839 = vmul.f32 %v1836, %v1838
    %v1840 = vsub.f32 1.0, %v1839
    %v1841 = vmul.f32 %v1838, %v1840
    %v1842 = vadd.f32 %v1838, %v1841
    %vm1843 = vweird.f32 %v1836
    %vm1844 = vweird.f32 %v1838
    %vm1845 = vmor %vm1843, %vm1844
    %v1846 = vsel %vm1845, %v1838, %v1842
    %v1847 = vand.u32 2147483647, %v1836
    %vm1848 = vcmp.eq.f32.partialorder %v1847, 8.507059e+37
    %v1849 = vand.u32 %v1836, 2147483648
    %v1850 = vor.u32 1.1754944e-38, %v1849
    %v1851 = vsel %vm1848, %v1850, %v1846
    %v1852 = vmul.f32 1.0, %v1851
    %v1853 = vrcp.pop %v1837
    %v1854 = vmul.f32 %v1837, %v1853
    %v1855 = vsub.f32 1.0, %v1854
    %v1856 = vmul.f32 %v1853, %v1855
    %v1857 = vadd.f32 %v1853, %v1856
    %vm1858 = vweird.f32 %v1837
    %vm1859 = vweird.f32 %v1853
    %vm1860 = vmor %vm1858, %vm1859
    %v1861 = vsel %vm1860, %v1853, %v1857
    %v1862 = vand.u32 2147483647, %v1837
    %vm1863 = vcmp.eq.f32.partialorder %v1862, 8.507059e+37
    %v1864 = vand.u32 %v1837, 2147483648
    %v1865 = vor.u32 1.1754944e-38, %v1864
    %v1866 = vsel %vm1863, %v1865, %v1861
    %v1867 = vmul.f32 1.0, %v1866
    %v1868 = vtanh.pop %v1829
    %v1869 = vmul.f32 %v1852, %v1791
    %1871 = vrot.lane.b32.xlu0 %v1868, 64
    %v1872 = vpop.permute.xlu0 %1871
    %v1874 = vmul.f32 %v1852, %v1872
    %1876 = vrot.lane.b32.xlu0 %v1874, 64
    %v1877 = vpop.permute.xlu0 %1876
    %v1879 = vadd.f32 %v1869, %v1877
    %v1880 = vtanh.pop %v1879
    %1882 = vrot.lane.b32.xlu0 %v1880, 64
    %v1883 = vpop.permute.xlu0 %1882
    %v1885 = vmul.f32 %v1867, %v1883
    %v1886 = vpack.c.bf16 %v1885, %v1885
    %v1888 = vsel %vm487, %v1886, 0
    %1890 = vmatpush.bf16.msra.mxu0 0
    %1891 = vmatpush.bf16.msra.mxu0 0
    %1892 = vmatpush.bf16.msra.mxu0 0
    %1893 = vmatpush.bf16.msra.mxu0 0
    %1894 = vmatpush.bf16.msra.mxu0 %v1085
    %1895 = vmatpush.bf16.msra.mxu0 %v1083
    %1896 = vmatpush.bf16.msra.mxu0 %v1081
    %1897 = vmatpush.bf16.msra.mxu0 %v1079
    %1898 = vmatmul.bf16.gmra.mxu0 %v1888
    %v1899 = vpop.f32.mrf.mxu0
    %v1900 = vadd.f32 0.0, %v1899
    %v1901 = vpop.f32.mrf.mxu0
    %1902 = vdwg.mxu0
    %1903 = vmatpush.bf16.msra.mxu0 0
    %1904 = vmatpush.bf16.msra.mxu0 0
    %1905 = vmatpush.bf16.msra.mxu0 0
    %1906 = vmatpush.bf16.msra.mxu0 0
    %1907 = vmatpush.bf16.msra.mxu0 %v1086
    %1908 = vmatpush.bf16.msra.mxu0 %v1084
    %1909 = vmatpush.bf16.msra.mxu0 %v1082
    %1910 = vmatpush.bf16.msra.mxu0 %v1080
    %1911 = vmatmul.bf16.gmra.mxu0 %v1888
    %v1912 = vpop.f32.mrf.mxu0
    %v1913 = vadd.f32 0.0, %v1912
    %v1914 = vpop.f32.mrf.mxu0
    %1915 = vdwg.mxu0
    %v1916 = vadd.f32 %v1025, %v1900
    %v1917 = vadd.f32 %v1026, %v1913
    %v1918 = vxor.u32 %v1916, 2147483648
    %v1919 = vxor.u32 %v1917, 2147483648
    %v1920 = vmul.f32 %v1918, 1.442695
    %v1921 = vpow.pop %v1920
    %v1922 = vmul.f32 %v1919, 1.442695
    %v1923 = vpow.pop %v1922
    %v1924 = vadd.f32 %v1921, 1.0
    %v1925 = vadd.f32 %v1923, 1.0
    %v1926 = vrcp.pop %v1924
    %v1927 = vmul.f32 %v1924, %v1926
    %v1928 = vsub.f32 1.0, %v1927
    %v1929 = vmul.f32 %v1926, %v1928
    %v1930 = vadd.f32 %v1926, %v1929
    %vm1931 = vweird.f32 %v1924
    %vm1932 = vweird.f32 %v1926
    %vm1933 = vmor %vm1931, %vm1932
    %v1934 = vsel %vm1933, %v1926, %v1930
    %v1935 = vand.u32 2147483647, %v1924
    %vm1936 = vcmp.eq.f32.partialorder %v1935, 8.507059e+37
    %v1937 = vand.u32 %v1924, 2147483648
    %v1938 = vor.u32 1.1754944e-38, %v1937
    %v1939 = vsel %vm1936, %v1938, %v1934
    %v1940 = vmul.f32 1.0, %v1939
    %v1941 = vrcp.pop %v1925
    %v1942 = vmul.f32 %v1925, %v1941
    %v1943 = vsub.f32 1.0, %v1942
    %v1944 = vmul.f32 %v1941, %v1943
    %v1945 = vadd.f32 %v1941, %v1944
    %vm1946 = vweird.f32 %v1925
    %vm1947 = vweird.f32 %v1941
    %vm1948 = vmor %vm1946, %vm1947
    %v1949 = vsel %vm1948, %v1941, %v1945
    %v1950 = vand.u32 2147483647, %v1925
    %vm1951 = vcmp.eq.f32.partialorder %v1950, 8.507059e+37
    %v1952 = vand.u32 %v1925, 2147483648
    %v1953 = vor.u32 1.1754944e-38, %v1952
    %v1954 = vsel %vm1951, %v1953, %v1949
    %v1955 = vmul.f32 1.0, %v1954
    %v1956 = vtanh.pop %v1917
    %v1957 = vmul.f32 %v1940, %v1879
    %1959 = vrot.lane.b32.xlu0 %v1956, 64
    %v1960 = vpop.permute.xlu0 %1959
    %v1962 = vmul.f32 %v1940, %v1960
    %1964 = vrot.lane.b32.xlu0 %v1962, 64
    %v1965 = vpop.permute.xlu0 %1964
    %v1967 = vadd.f32 %v1957, %v1965
    %v1968 = vtanh.pop %v1967
    %1970 = vrot.lane.b32.xlu0 %v1968, 64
    %v1971 = vpop.permute.xlu0 %1970
    %v1973 = vmul.f32 %v1955, %v1971
    %v1974 = vpack.c.bf16 %v1973, %v1973
    %v1976 = vsel %vm487, %v1974, 0
    %1978 = vmatpush.bf16.msra.mxu0 0
    %1979 = vmatpush.bf16.msra.mxu0 0
    %1980 = vmatpush.bf16.msra.mxu0 0
    %1981 = vmatpush.bf16.msra.mxu0 0
    %1982 = vmatpush.bf16.msra.mxu0 %v1085
    %1983 = vmatpush.bf16.msra.mxu0 %v1083
    %1984 = vmatpush.bf16.msra.mxu0 %v1081
    %1985 = vmatpush.bf16.msra.mxu0 %v1079
    %1986 = vmatmul.bf16.gmra.mxu0 %v1976
    %v1987 = vpop.f32.mrf.mxu0
    %v1988 = vadd.f32 0.0, %v1987
    %v1989 = vpop.f32.mrf.mxu0
    %1990 = vdwg.mxu0
    %1991 = vmatpush.bf16.msra.mxu0 0
    %1992 = vmatpush.bf16.msra.mxu0 0
    %1993 = vmatpush.bf16.msra.mxu0 0
    %1994 = vmatpush.bf16.msra.mxu0 0
    %1995 = vmatpush.bf16.msra.mxu0 %v1086
    %1996 = vmatpush.bf16.msra.mxu0 %v1084
    %1997 = vmatpush.bf16.msra.mxu0 %v1082
    %1998 = vmatpush.bf16.msra.mxu0 %v1080
    %1999 = vmatmul.bf16.gmra.mxu0 %v1976
    %v2000 = vpop.f32.mrf.mxu0
    %v2001 = vadd.f32 0.0, %v2000
    %v2002 = vpop.f32.mrf.mxu0
    %2003 = vdwg.mxu0
    %v2004 = vadd.f32 %v1035, %v1988
    %v2005 = vadd.f32 %v1036, %v2001
    %v2006 = vxor.u32 %v2004, 2147483648
    %v2007 = vxor.u32 %v2005, 2147483648
    %v2008 = vmul.f32 %v2006, 1.442695
    %v2009 = vpow.pop %v2008
    %v2010 = vmul.f32 %v2007, 1.442695
    %v2011 = vpow.pop %v2010
    %v2012 = vadd.f32 %v2009, 1.0
    %v2013 = vadd.f32 %v2011, 1.0
    %v2014 = vrcp.pop %v2012
    %v2015 = vmul.f32 %v2012, %v2014
    %v2016 = vsub.f32 1.0, %v2015
    %v2017 = vmul.f32 %v2014, %v2016
    %v2018 = vadd.f32 %v2014, %v2017
    %vm2019 = vweird.f32 %v2012
    %vm2020 = vweird.f32 %v2014
    %vm2021 = vmor %vm2019, %vm2020
    %v2022 = vsel %vm2021, %v2014, %v2018
    %v2023 = vand.u32 2147483647, %v2012
    %vm2024 = vcmp.eq.f32.partialorder %v2023, 8.507059e+37
    %v2025 = vand.u32 %v2012, 2147483648
    %v2026 = vor.u32 1.1754944e-38, %v2025
    %v2027 = vsel %vm2024, %v2026, %v2022
    %v2028 = vmul.f32 1.0, %v2027
    %v2029 = vrcp.pop %v2013
    %v2030 = vmul.f32 %v2013, %v2029
    %v2031 = vsub.f32 1.0, %v2030
    %v2032 = vmul.f32 %v2029, %v2031
    %v2033 = vadd.f32 %v2029, %v2032
    %vm2034 = vweird.f32 %v2013
    %vm2035 = vweird.f32 %v2029
    %vm2036 = vmor %vm2034, %vm2035
    %v2037 = vsel %vm2036, %v2029, %v2033
    %v2038 = vand.u32 2147483647, %v2013
    %vm2039 = vcmp.eq.f32.partialorder %v2038, 8.507059e+37
    %v2040 = vand.u32 %v2013, 2147483648
    %v2041 = vor.u32 1.1754944e-38, %v2040
    %v2042 = vsel %vm2039, %v2041, %v2037
    %v2043 = vmul.f32 1.0, %v2042
    %v2044 = vtanh.pop %v2005
    %v2045 = vmul.f32 %v2028, %v1967
    %2047 = vrot.lane.b32.xlu0 %v2044, 64
    %v2048 = vpop.permute.xlu0 %2047
    %v2050 = vmul.f32 %v2028, %v2048
    %2052 = vrot.lane.b32.xlu0 %v2050, 64
    %v2053 = vpop.permute.xlu0 %2052
    %v2055 = vadd.f32 %v2045, %v2053
    %v2056 = vtanh.pop %v2055
    %2058 = vrot.lane.b32.xlu0 %v2056, 64
    %v2059 = vpop.permute.xlu0 %2058
    %v2061 = vmul.f32 %v2043, %v2059
    %v2062 = vpack.c.bf16 %v2061, %v2061
    %v2064 = vsel %vm487, %v2062, 0
    %2066 = vmatpush.bf16.msra.mxu0 0
    %2067 = vmatpush.bf16.msra.mxu0 0
    %2068 = vmatpush.bf16.msra.mxu0 0
    %2069 = vmatpush.bf16.msra.mxu0 0
    %2070 = vmatpush.bf16.msra.mxu0 %v1085
    %2071 = vmatpush.bf16.msra.mxu0 %v1083
    %2072 = vmatpush.bf16.msra.mxu0 %v1081
    %2073 = vmatpush.bf16.msra.mxu0 %v1079
    %2074 = vmatmul.bf16.gmra.mxu0 %v2064
    %v2075 = vpop.f32.mrf.mxu0
    %v2076 = vadd.f32 0.0, %v2075
    %v2077 = vpop.f32.mrf.mxu0
    %2078 = vdwg.mxu0
    %2079 = vmatpush.bf16.msra.mxu0 0
    %2080 = vmatpush.bf16.msra.mxu0 0
    %2081 = vmatpush.bf16.msra.mxu0 0
    %2082 = vmatpush.bf16.msra.mxu0 0
    %2083 = vmatpush.bf16.msra.mxu0 %v1086
    %2084 = vmatpush.bf16.msra.mxu0 %v1084
    %2085 = vmatpush.bf16.msra.mxu0 %v1082
    %2086 = vmatpush.bf16.msra.mxu0 %v1080
    %2087 = vmatmul.bf16.gmra.mxu0 %v2064
    %v2088 = vpop.f32.mrf.mxu0
    %v2089 = vadd.f32 0.0, %v2088
    %v2090 = vpop.f32.mrf.mxu0
    %2091 = vdwg.mxu0
    %v2092 = vadd.f32 %v1045, %v2076
    %v2093 = vadd.f32 %v1046, %v2089
    %v2094 = vxor.u32 %v2092, 2147483648
    %v2095 = vxor.u32 %v2093, 2147483648
    %v2096 = vmul.f32 %v2094, 1.442695
    %v2097 = vpow.pop %v2096
    %v2098 = vmul.f32 %v2095, 1.442695
    %v2099 = vpow.pop %v2098
    %v2100 = vadd.f32 %v2097, 1.0
    %v2101 = vadd.f32 %v2099, 1.0
    %v2102 = vrcp.pop %v2100
    %v2103 = vmul.f32 %v2100, %v2102
    %v2104 = vsub.f32 1.0, %v2103
    %v2105 = vmul.f32 %v2102, %v2104
    %v2106 = vadd.f32 %v2102, %v2105
    %vm2107 = vweird.f32 %v2100
    %vm2108 = vweird.f32 %v2102
    %vm2109 = vmor %vm2107, %vm2108
    %v2110 = vsel %vm2109, %v2102, %v2106
    %v2111 = vand.u32 2147483647, %v2100
    %vm2112 = vcmp.eq.f32.partialorder %v2111, 8.507059e+37
    %v2113 = vand.u32 %v2100, 2147483648
    %v2114 = vor.u32 1.1754944e-38, %v2113
    %v2115 = vsel %vm2112, %v2114, %v2110
    %v2116 = vmul.f32 1.0, %v2115
    %v2117 = vrcp.pop %v2101
    %v2118 = vmul.f32 %v2101, %v2117
    %v2119 = vsub.f32 1.0, %v2118
    %v2120 = vmul.f32 %v2117, %v2119
    %v2121 = vadd.f32 %v2117, %v2120
    %vm2122 = vweird.f32 %v2101
    %vm2123 = vweird.f32 %v2117
    %vm2124 = vmor %vm2122, %vm2123
    %v2125 = vsel %vm2124, %v2117, %v2121
    %v2126 = vand.u32 2147483647, %v2101
    %vm2127 = vcmp.eq.f32.partialorder %v2126, 8.507059e+37
    %v2128 = vand.u32 %v2101, 2147483648
    %v2129 = vor.u32 1.1754944e-38, %v2128
    %v2130 = vsel %vm2127, %v2129, %v2125
    %v2131 = vmul.f32 1.0, %v2130
    %v2132 = vtanh.pop %v2093
    %v2133 = vmul.f32 %v2116, %v2055
    %2135 = vrot.lane.b32.xlu0 %v2132, 64
    %v2136 = vpop.permute.xlu0 %2135
    %v2138 = vmul.f32 %v2116, %v2136
    %2140 = vrot.lane.b32.xlu0 %v2138, 64
    %v2141 = vpop.permute.xlu0 %2140
    %v2143 = vadd.f32 %v2133, %v2141
    %v2144 = vtanh.pop %v2143
    %2146 = vrot.lane.b32.xlu0 %v2144, 64
    %v2147 = vpop.permute.xlu0 %2146
    %v2149 = vmul.f32 %v2131, %v2147
    %2151 = vrot.lane.b32.xlu0 %v1269, 64
    %v2152 = vpop.permute.xlu0 %2151
    %2155 = vrot.lane.b32.xlu0 %v1445, 64
    %v2156 = vpop.permute.xlu0 %2155
    %2159 = vrot.lane.b32.xlu0 %v1621, 64
    %v2160 = vpop.permute.xlu0 %2159
    %2163 = vrot.lane.b32.xlu0 %v1797, 64
    %v2164 = vpop.permute.xlu0 %2163
    %2167 = vrot.lane.b32.xlu0 %v1973, 64
    %v2168 = vpop.permute.xlu0 %2167
    %2171 = vrot.lane.b32.xlu0 %v2149, 64
    %v2172 = vpop.permute.xlu0 %2171
    %v2174 = vsel %vm487, %v1181, %v2152
    %v2175 = vsel %vm487, %v1357, %v2156
    %v2176 = vsel %vm487, %v1533, %v2160
    %v2177 = vsel %vm487, %v1709, %v2164
    %v2178 = vsel %vm487, %v1885, %v2168
    %v2179 = vsel %vm487, %v2061, %v2172
    %v2180 = vpack.c.bf16 %v2174, %v2174
    %v2181 = vpack.c.bf16 %v2175, %v2175
    %v2182 = vpack.c.bf16 %v2176, %v2176
    %v2183 = vpack.c.bf16 %v2177, %v2177
    %v2184 = vpack.c.bf16 %v2178, %v2178
    %v2185 = vpack.c.bf16 %v2179, %v2179
    %v2186 = vld [vmem:[%s6] sm:$0xf]
    %v2187 = vld [vmem:[%s6 + $0x4] sm:$0xf]
    %v2188 = vld [vmem:[%s6 + $0x8] sm:$0xf]
    %v2189 = vld [vmem:[%s6 + $0xc] sm:$0xf]
    %v2190 = vld [vmem:[%s6 + $0x10] sm:$0xf]
    %v2191 = vld [vmem:[%s6 + $0x14] sm:$0xf]
    %v2192 = vld [vmem:[%s6 + $0x18] sm:$0xf]
    %v2193 = vld [vmem:[%s6 + $0x1c] sm:$0xf]
    %v2194 = vld [vmem:[%s6 + $0x20] sm:$0xf]
    %v2195 = vld [vmem:[%s6 + $0x24] sm:$0xf]
    %v2196 = vld [vmem:[%s6 + $0x28] sm:$0xf]
    %v2197 = vld [vmem:[%s6 + $0x2c] sm:$0xf]
    %v2198 = vld [vmem:[%s6 + $0x30] sm:$0xf]
    %v2199 = vld [vmem:[%s6 + $0x34] sm:$0xf]
    %v2200 = vld [vmem:[%s6 + $0x38] sm:$0xf]
    %v2201 = vld [vmem:[%s6 + $0x3c] sm:$0xf]
    %v2202 = vld [vmem:[%s6 + $0x40] sm:$0xf]
    %v2203 = vld [vmem:[%s6 + $0x44] sm:$0xf]
    %v2204 = vld [vmem:[%s6 + $0x48] sm:$0xf]
    %v2205 = vld [vmem:[%s6 + $0x4c] sm:$0xf]
    %v2206 = vld [vmem:[%s6 + $0x50] sm:$0xf]
    %v2207 = vld [vmem:[%s6 + $0x54] sm:$0xf]
    %v2208 = vld [vmem:[%s6 + $0x58] sm:$0xf]
    %v2209 = vld [vmem:[%s6 + $0x5c] sm:$0xf]
    %v2210 = vld [vmem:[%s6 + $0x60] sm:$0xf]
    %v2211 = vld [vmem:[%s6 + $0x64] sm:$0xf]
    %v2212 = vld [vmem:[%s6 + $0x68] sm:$0xf]
    %v2213 = vld [vmem:[%s6 + $0x6c] sm:$0xf]
    %v2214 = vld [vmem:[%s6 + $0x70] sm:$0xf]
    %v2215 = vld [vmem:[%s6 + $0x74] sm:$0xf]
    %v2216 = vld [vmem:[%s6 + $0x78] sm:$0xf]
    %v2217 = vld [vmem:[%s6 + $0x7c] sm:$0xf]
    %v2218 = vld [vmem:[%s6 + $0x80] sm:$0xf]
    %v2219 = vld [vmem:[%s6 + $0x84] sm:$0xf]
    %v2220 = vld [vmem:[%s6 + $0x88] sm:$0xf]
    %v2221 = vld [vmem:[%s6 + $0x8c] sm:$0xf]
    %v2222 = vld [vmem:[%s6 + $0x90] sm:$0xf]
    %v2223 = vld [vmem:[%s6 + $0x94] sm:$0xf]
    %v2224 = vld [vmem:[%s6 + $0x98] sm:$0xf]
    %v2225 = vld [vmem:[%s6 + $0x9c] sm:$0xf]
    %v2226 = vld [vmem:[%s6 + $0xa0] sm:$0xf]
    %v2227 = vld [vmem:[%s6 + $0xa4] sm:$0xf]
    %v2228 = vld [vmem:[%s6 + $0xa8] sm:$0xf]
    %v2229 = vld [vmem:[%s6 + $0xac] sm:$0xf]
    %v2230 = vld [vmem:[%s6 + $0xb0] sm:$0xf]
    %v2231 = vld [vmem:[%s6 + $0xb4] sm:$0xf]
    %v2232 = vld [vmem:[%s6 + $0xb8] sm:$0xf]
    %v2233 = vld [vmem:[%s6 + $0xbc] sm:$0xf]
    %v2234 = vld [vmem:[%s6 + $0xc0] sm:$0xf]
    %v2235 = vld [vmem:[%s6 + $0xc4] sm:$0xf]
    %v2236 = vld [vmem:[%s6 + $0xc8] sm:$0xf]
    %v2237 = vld [vmem:[%s6 + $0xcc] sm:$0xf]
    %v2238 = vld [vmem:[%s6 + $0xd0] sm:$0xf]
    %v2239 = vld [vmem:[%s6 + $0xd4] sm:$0xf]
    %v2240 = vld [vmem:[%s6 + $0xd8] sm:$0xf]
    %v2241 = vld [vmem:[%s6 + $0xdc] sm:$0xf]
    %v2242 = vld [vmem:[%s6 + $0xe0] sm:$0xf]
    %v2243 = vld [vmem:[%s6 + $0xe4] sm:$0xf]
    %v2244 = vld [vmem:[%s6 + $0xe8] sm:$0xf]
    %v2245 = vld [vmem:[%s6 + $0xec] sm:$0xf]
    %v2246 = vld [vmem:[%s6 + $0xf0] sm:$0xf]
    %v2247 = vld [vmem:[%s6 + $0xf4] sm:$0xf]
    %v2248 = vld [vmem:[%s6 + $0xf8] sm:$0xf]
    %v2249 = vld [vmem:[%s6 + $0xfc] sm:$0xf]
    %v2250 = vld [vmem:[%s6 + $0x100] sm:$0xf]
    %v2251 = vld [vmem:[%s6 + $0x104] sm:$0xf]
    %v2252 = vld [vmem:[%s6 + $0x108] sm:$0xf]
    %v2253 = vld [vmem:[%s6 + $0x10c] sm:$0xf]
    %v2254 = vld [vmem:[%s6 + $0x110] sm:$0xf]
    %v2255 = vld [vmem:[%s6 + $0x114] sm:$0xf]
    %v2256 = vld [vmem:[%s6 + $0x118] sm:$0xf]
    %v2257 = vld [vmem:[%s6 + $0x11c] sm:$0xf]
    %v2258 = vld [vmem:[%s6 + $0x120] sm:$0xf]
    %v2259 = vld [vmem:[%s6 + $0x124] sm:$0xf]
    %v2260 = vld [vmem:[%s6 + $0x128] sm:$0xf]
    %v2261 = vld [vmem:[%s6 + $0x12c] sm:$0xf]
    %v2262 = vld [vmem:[%s6 + $0x130] sm:$0xf]
    %v2263 = vld [vmem:[%s6 + $0x134] sm:$0xf]
    %v2264 = vld [vmem:[%s6 + $0x138] sm:$0xf]
    %v2265 = vld [vmem:[%s6 + $0x13c] sm:$0xf]
    %v2266 = vld [vmem:[%s6 + $0x140] sm:$0xf]
    %v2267 = vld [vmem:[%s6 + $0x144] sm:$0xf]
    %v2268 = vld [vmem:[%s6 + $0x148] sm:$0xf]
    %v2269 = vld [vmem:[%s6 + $0x14c] sm:$0xf]
    %v2270 = vld [vmem:[%s6 + $0x150] sm:$0xf]
    %v2271 = vld [vmem:[%s6 + $0x154] sm:$0xf]
    %v2272 = vld [vmem:[%s6 + $0x158] sm:$0xf]
    %v2273 = vld [vmem:[%s6 + $0x15c] sm:$0xf]
    %v2274 = vld [vmem:[%s6 + $0x160] sm:$0xf]
    %v2275 = vld [vmem:[%s6 + $0x164] sm:$0xf]
    %v2276 = vld [vmem:[%s6 + $0x168] sm:$0xf]
    %v2277 = vld [vmem:[%s6 + $0x16c] sm:$0xf]
    %v2278 = vld [vmem:[%s6 + $0x170] sm:$0xf]
    %v2279 = vld [vmem:[%s6 + $0x174] sm:$0xf]
    %v2280 = vld [vmem:[%s6 + $0x178] sm:$0xf]
    %v2281 = vld [vmem:[%s6 + $0x17c] sm:$0xf]
    %v2282 = vld [vmem:[%s7] sm:$0x1]
    %v2284 = vperm.slane %v2282, 0
    %v2382 = vunpack.c.l.b16 %v2186
    %v2383 = vunpack.c.l.b16 %v2187
    %v2384 = vunpack.c.l.b16 %v2188
    %v2385 = vunpack.c.l.b16 %v2189
    %v2386 = vunpack.c.l.b16 %v2190
    %v2387 = vunpack.c.l.b16 %v2191
    %v2388 = vunpack.c.l.b16 %v2192
    %v2389 = vunpack.c.l.b16 %v2193
    %v2390 = vunpack.c.l.b16 %v2194
    %v2391 = vunpack.c.l.b16 %v2195
    %v2392 = vunpack.c.l.b16 %v2196
    %v2393 = vunpack.c.l.b16 %v2197
    %v2394 = vunpack.c.l.b16 %v2198
    %v2395 = vunpack.c.l.b16 %v2199
    %v2396 = vunpack.c.l.b16 %v2200
    %v2397 = vunpack.c.l.b16 %v2201
    %v2398 = vunpack.c.l.b16 %v2202
    %v2399 = vunpack.c.l.b16 %v2203
    %v2400 = vunpack.c.l.b16 %v2204
    %v2401 = vunpack.c.l.b16 %v2205
    %v2402 = vunpack.c.l.b16 %v2206
    %v2403 = vunpack.c.l.b16 %v2207
    %v2404 = vunpack.c.l.b16 %v2208
    %v2405 = vunpack.c.l.b16 %v2209
    %v2406 = vunpack.c.l.b16 %v2210
    %v2407 = vunpack.c.l.b16 %v2211
    %v2408 = vunpack.c.l.b16 %v2212
    %v2409 = vunpack.c.l.b16 %v2213
    %v2410 = vunpack.c.l.b16 %v2214
    %v2411 = vunpack.c.l.b16 %v2215
    %v2412 = vunpack.c.l.b16 %v2216
    %v2413 = vunpack.c.l.b16 %v2217
    %v2414 = vunpack.c.l.b16 %v2218
    %v2415 = vunpack.c.l.b16 %v2219
    %v2416 = vunpack.c.l.b16 %v2220
    %v2417 = vunpack.c.l.b16 %v2221
    %v2418 = vunpack.c.l.b16 %v2222
    %v2419 = vunpack.c.l.b16 %v2223
    %v2420 = vunpack.c.l.b16 %v2224
    %v2421 = vunpack.c.l.b16 %v2225
    %v2422 = vunpack.c.l.b16 %v2226
    %v2423 = vunpack.c.l.b16 %v2227
    %v2424 = vunpack.c.l.b16 %v2228
    %v2425 = vunpack.c.l.b16 %v2229
    %v2426 = vunpack.c.l.b16 %v2230
    %v2427 = vunpack.c.l.b16 %v2231
    %v2428 = vunpack.c.l.b16 %v2232
    %v2429 = vunpack.c.l.b16 %v2233
    %v2430 = vunpack.c.l.b16 %v2234
    %v2431 = vunpack.c.l.b16 %v2235
    %v2432 = vunpack.c.l.b16 %v2236
    %v2433 = vunpack.c.l.b16 %v2237
    %v2434 = vunpack.c.l.b16 %v2238
    %v2435 = vunpack.c.l.b16 %v2239
    %v2436 = vunpack.c.l.b16 %v2240
    %v2437 = vunpack.c.l.b16 %v2241
    %v2438 = vunpack.c.l.b16 %v2242
    %v2439 = vunpack.c.l.b16 %v2243
    %v2440 = vunpack.c.l.b16 %v2244
    %v2441 = vunpack.c.l.b16 %v2245
    %v2442 = vunpack.c.l.b16 %v2246
    %v2443 = vunpack.c.l.b16 %v2247
    %v2444 = vunpack.c.l.b16 %v2248
    %v2445 = vunpack.c.l.b16 %v2249
    %v2446 = vunpack.c.l.b16 %v2250
    %v2447 = vunpack.c.l.b16 %v2251
    %v2448 = vunpack.c.l.b16 %v2252
    %v2449 = vunpack.c.l.b16 %v2253
    %v2450 = vunpack.c.l.b16 %v2254
    %v2451 = vunpack.c.l.b16 %v2255
    %v2452 = vunpack.c.l.b16 %v2256
    %v2453 = vunpack.c.l.b16 %v2257
    %v2454 = vunpack.c.l.b16 %v2258
    %v2455 = vunpack.c.l.b16 %v2259
    %v2456 = vunpack.c.l.b16 %v2260
    %v2457 = vunpack.c.l.b16 %v2261
    %v2458 = vunpack.c.l.b16 %v2262
    %v2459 = vunpack.c.l.b16 %v2263
    %v2460 = vunpack.c.l.b16 %v2264
    %v2461 = vunpack.c.l.b16 %v2265
    %v2462 = vunpack.c.l.b16 %v2266
    %v2463 = vunpack.c.l.b16 %v2267
    %v2464 = vunpack.c.l.b16 %v2268
    %v2465 = vunpack.c.l.b16 %v2269
    %v2466 = vunpack.c.l.b16 %v2270
    %v2467 = vunpack.c.l.b16 %v2271
    %v2468 = vunpack.c.l.b16 %v2272
    %v2469 = vunpack.c.l.b16 %v2273
    %v2470 = vunpack.c.l.b16 %v2274
    %v2471 = vunpack.c.l.b16 %v2275
    %v2472 = vunpack.c.l.b16 %v2276
    %v2473 = vunpack.c.l.b16 %v2277
    %v2474 = vunpack.c.l.b16 %v2278
    %v2475 = vunpack.c.l.b16 %v2279
    %v2476 = vunpack.c.l.b16 %v2280
    %v2477 = vunpack.c.l.b16 %v2281
    %v2478 = vpack.c.b16 %v2383, %v2382
    %v2479 = vpack.c.b16 %v2385, %v2384
    %v2480 = vpack.c.b16 %v2387, %v2386
    %v2481 = vpack.c.b16 %v2389, %v2388
    %v2482 = vpack.c.b16 %v2391, %v2390
    %v2483 = vpack.c.b16 %v2393, %v2392
    %v2484 = vpack.c.b16 %v2395, %v2394
    %v2485 = vpack.c.b16 %v2397, %v2396
    %v2486 = vpack.c.b16 %v2399, %v2398
    %v2487 = vpack.c.b16 %v2401, %v2400
    %v2488 = vpack.c.b16 %v2403, %v2402
    %v2489 = vpack.c.b16 %v2405, %v2404
    %v2490 = vpack.c.b16 %v2407, %v2406
    %v2491 = vpack.c.b16 %v2409, %v2408
    %v2492 = vpack.c.b16 %v2411, %v2410
    %v2493 = vpack.c.b16 %v2413, %v2412
    %v2494 = vpack.c.b16 %v2415, %v2414
    %v2495 = vpack.c.b16 %v2417, %v2416
    %v2496 = vpack.c.b16 %v2419, %v2418
    %v2497 = vpack.c.b16 %v2421, %v2420
    %v2498 = vpack.c.b16 %v2423, %v2422
    %v2499 = vpack.c.b16 %v2425, %v2424
    %v2500 = vpack.c.b16 %v2427, %v2426
    %v2501 = vpack.c.b16 %v2429, %v2428
    %v2502 = vpack.c.b16 %v2431, %v2430
    %v2503 = vpack.c.b16 %v2433, %v2432
    %v2504 = vpack.c.b16 %v2435, %v2434
    %v2505 = vpack.c.b16 %v2437, %v2436
    %v2506 = vpack.c.b16 %v2439, %v2438
    %v2507 = vpack.c.b16 %v2441, %v2440
    %v2508 = vpack.c.b16 %v2443, %v2442
    %v2509 = vpack.c.b16 %v2445, %v2444
    %v2510 = vpack.c.b16 %v2447, %v2446
    %v2511 = vpack.c.b16 %v2449, %v2448
    %v2512 = vpack.c.b16 %v2451, %v2450
    %v2513 = vpack.c.b16 %v2453, %v2452
    %v2514 = vpack.c.b16 %v2455, %v2454
    %v2515 = vpack.c.b16 %v2457, %v2456
    %v2516 = vpack.c.b16 %v2459, %v2458
    %v2517 = vpack.c.b16 %v2461, %v2460
    %v2518 = vpack.c.b16 %v2463, %v2462
    %v2519 = vpack.c.b16 %v2465, %v2464
    %v2520 = vpack.c.b16 %v2467, %v2466
    %v2521 = vpack.c.b16 %v2469, %v2468
    %v2522 = vpack.c.b16 %v2471, %v2470
    %v2523 = vpack.c.b16 %v2473, %v2472
    %v2524 = vpack.c.b16 %v2475, %v2474
    %v2525 = vpack.c.b16 %v2477, %v2476
    %2574 = vmatpush.bf16.msra.mxu0 %v2485
    %2575 = vmatpush.bf16.msra.mxu0 %v2484
    %2576 = vmatpush.bf16.msra.mxu0 %v2483
    %2577 = vmatpush.bf16.msra.mxu0 %v2482
    %2578 = vmatpush.bf16.msra.mxu0 %v2481
    %2579 = vmatpush.bf16.msra.mxu0 %v2480
    %2580 = vmatpush.bf16.msra.mxu0 %v2479
    %2581 = vmatpush.bf16.msra.mxu0 %v2478
    %2582 = vmatmul.bf16.gmra.mxu0 %v2180
    %v2583 = vpop.f32.mrf.mxu0
    %v2584 = vadd.f32 %v2284, %v2583
    %v2585 = vpop.f32.mrf.mxu0
    %2586 = vdwg.mxu0
    %2587 = vmatpush.bf16.msra.mxu0 %v2493
    %2588 = vmatpush.bf16.msra.mxu0 %v2492
    %2589 = vmatpush.bf16.msra.mxu0 %v2491
    %2590 = vmatpush.bf16.msra.mxu0 %v2490
    %2591 = vmatpush.bf16.msra.mxu0 %v2489
    %2592 = vmatpush.bf16.msra.mxu0 %v2488
    %2593 = vmatpush.bf16.msra.mxu0 %v2487
    %2594 = vmatpush.bf16.msra.mxu0 %v2486
    %2595 = vmatmul.bf16.gmra.mxu0 %v2181
    %v2596 = vpop.f32.mrf.mxu0
    %v2597 = vadd.f32 %v2584, %v2596
    %v2598 = vpop.f32.mrf.mxu0
    %2599 = vdwg.mxu0
    %2600 = vmatpush.bf16.msra.mxu0 %v2501
    %2601 = vmatpush.bf16.msra.mxu0 %v2500
    %2602 = vmatpush.bf16.msra.mxu0 %v2499
    %2603 = vmatpush.bf16.msra.mxu0 %v2498
    %2604 = vmatpush.bf16.msra.mxu0 %v2497
    %2605 = vmatpush.bf16.msra.mxu0 %v2496
    %2606 = vmatpush.bf16.msra.mxu0 %v2495
    %2607 = vmatpush.bf16.msra.mxu0 %v2494
    %2608 = vmatmul.bf16.gmra.mxu0 %v2182
    %v2609 = vpop.f32.mrf.mxu0
    %v2610 = vadd.f32 %v2597, %v2609
    %v2611 = vpop.f32.mrf.mxu0
    %2612 = vdwg.mxu0
    %2613 = vmatpush.bf16.msra.mxu0 %v2509
    %2614 = vmatpush.bf16.msra.mxu0 %v2508
    %2615 = vmatpush.bf16.msra.mxu0 %v2507
    %2616 = vmatpush.bf16.msra.mxu0 %v2506
    %2617 = vmatpush.bf16.msra.mxu0 %v2505
    %2618 = vmatpush.bf16.msra.mxu0 %v2504
    %2619 = vmatpush.bf16.msra.mxu0 %v2503
    %2620 = vmatpush.bf16.msra.mxu0 %v2502
    %2621 = vmatmul.bf16.gmra.mxu0 %v2183
    %v2622 = vpop.f32.mrf.mxu0
    %v2623 = vadd.f32 %v2610, %v2622
    %v2624 = vpop.f32.mrf.mxu0
    %2625 = vdwg.mxu0
    %2626 = vmatpush.bf16.msra.mxu0 %v2517
    %2627 = vmatpush.bf16.msra.mxu0 %v2516
    %2628 = vmatpush.bf16.msra.mxu0 %v2515
    %2629 = vmatpush.bf16.msra.mxu0 %v2514
    %2630 = vmatpush.bf16.msra.mxu0 %v2513
    %2631 = vmatpush.bf16.msra.mxu0 %v2512
    %2632 = vmatpush.bf16.msra.mxu0 %v2511
    %2633 = vmatpush.bf16.msra.mxu0 %v2510
    %2634 = vmatmul.bf16.gmra.mxu0 %v2184
    %v2635 = vpop.f32.mrf.mxu0
    %v2636 = vadd.f32 %v2623, %v2635
    %v2637 = vpop.f32.mrf.mxu0
    %2638 = vdwg.mxu0
    %2639 = vmatpush.bf16.msra.mxu0 %v2525
    %2640 = vmatpush.bf16.msra.mxu0 %v2524
    %2641 = vmatpush.bf16.msra.mxu0 %v2523
    %2642 = vmatpush.bf16.msra.mxu0 %v2522
    %2643 = vmatpush.bf16.msra.mxu0 %v2521
    %2644 = vmatpush.bf16.msra.mxu0 %v2520
    %2645 = vmatpush.bf16.msra.mxu0 %v2519
    %2646 = vmatpush.bf16.msra.mxu0 %v2518
    %2647 = vmatmul.bf16.gmra.mxu0 %v2185
    %v2648 = vpop.f32.mrf.mxu0
    %v2649 = vadd.f32 %v2636, %v2648
    %v2650 = vpop.f32.mrf.mxu0
    %2651 = vdwg.mxu0
    %v2652 = vmax.f32 %v2649, 0.0
    %v2653 = vpack.c.bf16 %v2652, %v2652
    %v2654 = vld [vmem:[%s8] sm:$0xf]
    %v2655 = vld [vmem:[%s8 + $0x4] sm:$0xf]
    %v2656 = vld [vmem:[%s8 + $0x8] sm:$0xf]
    %v2657 = vld [vmem:[%s8 + $0xc] sm:$0xf]
    %v2658 = vld [vmem:[%s8 + $0x10] sm:$0xf]
    %v2659 = vld [vmem:[%s8 + $0x14] sm:$0xf]
    %v2660 = vld [vmem:[%s8 + $0x18] sm:$0xf]
    %v2661 = vld [vmem:[%s8 + $0x1c] sm:$0xf]
    %v2662 = vld [vmem:[%s8 + $0x20] sm:$0xf]
    %v2663 = vld [vmem:[%s8 + $0x24] sm:$0xf]
    %v2664 = vld [vmem:[%s8 + $0x28] sm:$0xf]
    %v2665 = vld [vmem:[%s8 + $0x2c] sm:$0xf]
    %v2666 = vld [vmem:[%s8 + $0x30] sm:$0xf]
    %v2667 = vld [vmem:[%s8 + $0x34] sm:$0xf]
    %v2668 = vld [vmem:[%s8 + $0x38] sm:$0xf]
    %v2669 = vld [vmem:[%s8 + $0x3c] sm:$0xf]
    %v2670 = vld [vmem:[%s9] sm:$0x1]
    %v2672 = vperm.slane %v2670, 0
    %v2690 = vunpack.c.l.b16 %v2654
    %v2691 = vunpack.c.l.b16 %v2655
    %v2692 = vunpack.c.l.b16 %v2656
    %v2693 = vunpack.c.l.b16 %v2657
    %v2694 = vunpack.c.l.b16 %v2658
    %v2695 = vunpack.c.l.b16 %v2659
    %v2696 = vunpack.c.l.b16 %v2660
    %v2697 = vunpack.c.l.b16 %v2661
    %v2698 = vunpack.c.l.b16 %v2662
    %v2699 = vunpack.c.l.b16 %v2663
    %v2700 = vunpack.c.l.b16 %v2664
    %v2701 = vunpack.c.l.b16 %v2665
    %v2702 = vunpack.c.l.b16 %v2666
    %v2703 = vunpack.c.l.b16 %v2667
    %v2704 = vunpack.c.l.b16 %v2668
    %v2705 = vunpack.c.l.b16 %v2669
    %v2706 = vpack.c.b16 %v2691, %v2690
    %v2707 = vpack.c.b16 %v2693, %v2692
    %v2708 = vpack.c.b16 %v2695, %v2694
    %v2709 = vpack.c.b16 %v2697, %v2696
    %v2710 = vpack.c.b16 %v2699, %v2698
    %v2711 = vpack.c.b16 %v2701, %v2700
    %v2712 = vpack.c.b16 %v2703, %v2702
    %v2713 = vpack.c.b16 %v2705, %v2704
    %2722 = vmatpush.bf16.msra.mxu0 %v2713
    %2723 = vmatpush.bf16.msra.mxu0 %v2712
    %2724 = vmatpush.bf16.msra.mxu0 %v2711
    %2725 = vmatpush.bf16.msra.mxu0 %v2710
    %2726 = vmatpush.bf16.msra.mxu0 %v2709
    %2727 = vmatpush.bf16.msra.mxu0 %v2708
    %2728 = vmatpush.bf16.msra.mxu0 %v2707
    %2729 = vmatpush.bf16.msra.mxu0 %v2706
    %2730 = vmatmul.bf16.gmra.mxu0 %v2653
    %v2731 = vpop.f32.mrf.mxu0
    %v2732 = vadd.f32 %v2672, %v2731
    %v2733 = vpop.f32.mrf.mxu0
    %2734 = vdwg.mxu0
    %vm2735 = vcmask 9216
    %v2736 = vsel %vm2735, %v2732, -inf
    %2737 = vmax.xlane.f32.xlu0 %v2736
    %v2738 = vpop.xlane.xlu0 %2737
    %v2739 = vsub.f32 %v2732, %v2738
    %v2740 = vmul.f32 %v2739, 1.442695
    %v2741 = vpow.pop %v2740
    %v2742 = vsel %vm2735, %v2741, 0.0
    %2743 = vadd.xlane.f32.xlu0 %v2742
    %v2744 = vpop.xlane.xlu0 %2743
    %v2745 = vrcp.pop %v2744
    %v2746 = vmul.f32 %v2744, %v2745
    %v2747 = vsub.f32 1.0, %v2746
    %v2748 = vmul.f32 %v2745, %v2747
    %v2749 = vadd.f32 %v2745, %v2748
    %vm2750 = vweird.f32 %v2744
    %vm2751 = vweird.f32 %v2745
    %vm2752 = vmor %vm2750, %vm2751
    %v2753 = vsel %vm2752, %v2745, %v2749
    %v2754 = vand.u32 2147483647, %v2744
    %vm2755 = vcmp.eq.f32.partialorder %v2754, 8.507059e+37
    %v2756 = vand.u32 %v2744, 2147483648
    %v2757 = vor.u32 1.1754944e-38, %v2756
    %v2758 = vsel %vm2755, %v2757, %v2753
    %v2759 = vmul.f32 %v2741, %v2758
    %2760 = vst.msk [vmem:[#allocation2] sm:$0x3] %vm2735, %v2759
    // Predicated region
    $region42: #{_forward.1} parent=1 // pred_check
      _
    $region43: #{_forward.1} parent=1 // pred_check_branch
      %2762 = sbr.rel (0) target = $region45
    $region44: #{_forward.1} parent=1 // pred_region
      %2764 = vsyncadd [#allocation3], 0
      %s2766 = sshll.u32 [#allocation2], 4
      %s2767 = int_to_ptr.vmem [resolvable:$true] %s2766
      %s2768 = sshll.u32 %s10, 4
      %s2769 = int_to_ptr.hbm [resolvable:$true] %s2768
      %2771 = dma.vmem_to_hbm [thread:$0]  %s2767, 32, %s2769, [#allocation3]
    $region45: #{_forward.1} parent=1 // pred_fallthru
      _
    // Predicated region
    $region46: #{_forward.1} parent=1 // pred_check
      _
    $region47: #{_forward.1} parent=1 // pred_check_branch
      %2773 = sbr.rel (0) target = $region49
    $region48: #{_forward.1} parent=1 // pred_region
      %2775 = dma.done [#allocation3], 32
    $region49: #{_forward.1} parent=1 // pred_fallthru
      _
    %2776 = vsyncpa [#allocation3], 1

</llo_original>
